<compile_context>
chip_gen: v5e
topology: v5e:2x2
jax: 0.10.0
libtpu: 0.0.40
codegen_flags: <defaults>
</compile_context>

<pallas_src>
import numpy as np
import jax
import jax.numpy as jnp
from jax import lax
from jax.experimental import pallas as pl
from jax.experimental.pallas import tpu as pltpu

LANE = 128
VMEM_LIMIT_BYTES = 48 * 1024 * 1024   # safe on v5e/v6e (128 MiB phys) and v7x (64 MiB phys)
VMEM_TILE_BUDGET = 32 * 1024 * 1024   # working-set budget used to size the batch tile


# ----------------------------- small helpers --------------------------------

def _round_up(x, m):
    return ((x + m - 1) // m) * m


def _pick_batch_tile(B, per_row_bytes, fixed_bytes):
    """Largest batch tile (full batch when B <= 8, else a multiple of 8) whose
    estimated double-buffered working set fits the VMEM budget."""
    if B <= 8:
        return B
    best, tb = 8, 8
    while tb <= B:
        if tb * per_row_bytes + fixed_bytes <= VMEM_TILE_BUDGET:
            best = tb
        tb += 8
    return best


def _pad_gate_cols(w, H, HP):
    """(rows, 4*H) -> (rows, 4*HP): pad each of the 4 gate blocks (torch order
    i, f, g, o) independently so every gate starts on a 128-lane boundary."""
    w = w.astype(jnp.float32)
    if HP == H:
        return w
    rows = w.shape[0]
    w4 = w.reshape(rows, 4, H)
    return jnp.pad(w4, ((0, 0), (0, 0), (0, HP - H))).reshape(rows, 4 * HP)


def _pad_cols(x, H, HP):
    x = x.astype(jnp.float32)
    return x if HP == H else jnp.pad(x, ((0, 0), (0, HP - H)))


def _pad_rows(x, H, HP):
    x = x.astype(jnp.float32)
    return x if HP == H else jnp.pad(x, ((0, HP - H), (0, 0)))


def _time_mask(lengths, t_out):
    """(t_out, B, 1) f32 mask: 1 where t < lengths[b] (pad_packed_sequence zeros)."""
    return (jnp.arange(t_out, dtype=jnp.int32)[:, None, None]
            < jnp.asarray(lengths, jnp.int32)[None, :, None]).astype(jnp.float32)


def _full_spec(arr):
    n = arr.ndim
    return pl.BlockSpec(arr.shape, lambda *_: (0,) * n)


def _compiler_params():
    return pltpu.CompilerParams(dimension_semantics=("parallel",),
                                vmem_limit_bytes=VMEM_LIMIT_BYTES)


# ----------------------------- kernel bodies --------------------------------

def _lstm_recurrence(gx_ref, hs_ref, mask_ref, h0, c0, w_hh, t_out, HP):
    """Serial LSTM recurrence.  gx_ref holds the hoisted x@W_ih + (b_ih+b_hh)
    (time-major), so each step only does the irreducible h@W_hh matmul plus gate
    math.  Gate slices are 128-lane aligned (HP % 128 == 0) and per-step stores
    go to a lane-dense VMEM scratch.  Outputs at t >= lengths[b] are masked to 0
    (exactly what pad_packed_sequence produces).  Note: carried (h, c) keep
    updating past a sequence's length; they are never exposed, matching the
    original module which only uses the (masked) per-step outputs."""

    def step(t, h, c):
        gates = gx_ref[t] + jnp.dot(h, w_hh, preferred_element_type=jnp.float32)
        i_g = jax.nn.sigmoid(gates[:, 0 * HP:1 * HP])
        f_g = jax.nn.sigmoid(gates[:, 1 * HP:2 * HP])
        g_g = jnp.tanh(gates[:, 2 * HP:3 * HP])
        o_g = jax.nn.sigmoid(gates[:, 3 * HP:4 * HP])
        c_new = f_g * c + i_g * g_g
        h_new = o_g * jnp.tanh(c_new)
        hs_ref[t] = h_new * mask_ref[t]          # (tB, HP) lane-dense VMEM store
        return h_new, c_new

    if t_out <= 64:
        # fully unrolled -> scheduler sees across timesteps
        h, c = h0, c0
        for t in range(t_out):
            h, c = step(t, h, c)
    else:
        lax.fori_loop(0, t_out, lambda t, hc: step(t, *hc), (h0, c0))


def _predictor_kernel(inp_ref, mask_ref, h0_ref, c0_ref,
                      w_in_ref, w_ih_ref, w_hh_ref, b_ref, w_out_ref, b_out_ref,
                      pred_ref, hid_ref, emb_ref, gx_ref, hs_ref):
    # inp_ref : (T, tB, Din)    mask_ref : (t_out, tB, 1)
    # h0/c0   : (tB, HP)        weights gate-padded to HP (multiple of 128)
    # outputs : pred (t_out, tB, O), hid (t_out, tB, H), emb (T, tB, E)
    T, tB, Din = inp_ref.shape
    E = w_in_ref.shape[1]
    HP = h0_ref.shape[1]
    t_out, _, H = hid_ref.shape
    O = pred_ref.shape[2]

    # proj_inp (no bias): one MXU matmul over all timesteps.
    x2d = inp_ref[...].reshape(T * tB, Din)
    emb2d = jnp.dot(x2d, w_in_ref[...], preferred_element_type=jnp.float32)
    emb_ref[...] = emb2d.reshape(T, tB, E)

    # Hoisted input->gate matmul for the first t_out steps (rows are already
    # time-major), bias folded in; kept in VMEM scratch for the serial loop.
    gx = jnp.dot(emb2d[:t_out * tB], w_ih_ref[...],
                 preferred_element_type=jnp.float32) + b_ref[...]
    gx_ref[...] = gx.reshape(t_out, tB, 4 * HP)

    _lstm_recurrence(gx_ref, hs_ref, mask_ref, h0_ref[...], c0_ref[...],
                     w_hh_ref[...], t_out, HP)

    # dropout(p=0) is identity; proj_out + sigmoid as one big matmul.
    hid_pad = hs_ref[...]
    hid_ref[...] = hid_pad[:, :, :H]
    logits = jnp.dot(hid_pad.reshape(t_out * tB, HP), w_out_ref[...],
                     preferred_element_type=jnp.float32) + b_out_ref[...]
    pred_ref[...] = jax.nn.sigmoid(logits).reshape(t_out, tB, O)


def _make_corrector_kernel(apply_clamp):
    """CorrectorLSTM (activation='tanh', no input projection) fused with the
    SelfCorrectLSTM combine: out = clamp(pred + tanh(proj_out(hidden)), 0, 1)."""
    def kernel(x_ref, pred_in_ref, mask_ref, h0_ref, c0_ref,
               w_ih_ref, w_hh_ref, b_ref, w_out_ref, b_out_ref,
               pred_out_ref, hid_ref, gx_ref, hs_ref):
        t_out, tB, Dc = x_ref.shape
        HP = h0_ref.shape[1]
        H = hid_ref.shape[2]
        O = pred_out_ref.shape[2]

        gx = jnp.dot(x_ref[...].reshape(t_out * tB, Dc), w_ih_ref[...],
                     preferred_element_type=jnp.float32) + b_ref[...]
        gx_ref[...] = gx.reshape(t_out, tB, 4 * HP)

        _lstm_recurrence(gx_ref, hs_ref, mask_ref, h0_ref[...], c0_ref[...],
                         w_hh_ref[...], t_out, HP)

        hid_pad = hs_ref[...]
        hid_ref[...] = hid_pad[:, :, :H]
        logits = jnp.dot(hid_pad.reshape(t_out * tB, HP), w_out_ref[...],
                         preferred_element_type=jnp.float32) + b_out_ref[...]
        correct = jnp.tanh(logits).reshape(t_out, tB, O)
        out = pred_in_ref[...] + correct
        if apply_clamp:
            out = jnp.clip(out, 0.0, 1.0)
        pred_out_ref[...] = out
    return kernel


# --------------------------- pallas_call wrappers ----------------------------

def _predictor_time_major(inp, hidden, lengths, p):
    """PredictorLSTM forward; returns time-major (pred, hid, emb)."""
    h0, c0 = hidden
    B, T, Din = inp.shape
    H = h0.shape[-1]
    E = p["w_in"].shape[1]
    O = p["w_out"].shape[1]
    HP = _round_up(H, LANE)
    t_out = int(max(lengths))

    inp_t = jnp.transpose(inp, (1, 0, 2)).astype(jnp.float32)   # (T, B, Din)
    mask_t = _time_mask(lengths, t_out)                          # (t_out, B, 1)
    h0p = _pad_cols(h0[0], H, HP)
    c0p = _pad_cols(c0[0], H, HP)
    w_in = p["w_in"].astype(jnp.float32)
    w_ih = _pad_gate_cols(p["w_ih"], H, HP)
    w_hh = _pad_rows(_pad_gate_cols(p["w_hh"], H, HP), H, HP)
    bias = _pad_gate_cols(p["b_ih"] + p["b_hh"], H, HP)          # b_ih+b_hh folded once
    w_out = _pad_rows(p["w_out"], H, HP)
    b_out = p["b_out"].astype(jnp.float32)

    per_row = 4 * (2 * (T * Din + t_out + 2 * HP + t_out * (O + H) + T * E)
                   + t_out * 5 * HP)
    fixed = 4 * 2 * (Din * E + (E + HP) * 4 * HP + 4 * HP + HP * O + O)
    tB = _pick_batch_tile(B, per_row, fixed)
    grid = (pl.cdiv(B, tB),)

    in_specs = [
        pl.BlockSpec((T, tB, Din), lambda b: (0, b, 0)),
        pl.BlockSpec((t_out, tB, 1), lambda b: (0, b, 0)),
        pl.BlockSpec((tB, HP), lambda b: (b, 0)),
        pl.BlockSpec((tB, HP), lambda b: (b, 0)),
        _full_spec(w_in), _full_spec(w_ih), _full_spec(w_hh), _full_spec(bias),
        _full_spec(w_out), _full_spec(b_out),
    ]
    out_specs = (
        pl.BlockSpec((t_out, tB, O), lambda b: (0, b, 0)),
        pl.BlockSpec((t_out, tB, H), lambda b: (0, b, 0)),
        pl.BlockSpec((T, tB, E), lambda b: (0, b, 0)),
    )
    out_shape = (
        jax.ShapeDtypeStruct((t_out, B, O), jnp.float32),
        jax.ShapeDtypeStruct((t_out, B, H), jnp.float32),
        jax.ShapeDtypeStruct((T, B, E), jnp.float32),
    )
    scratch = [pltpu.VMEM((t_out, tB, 4 * HP), jnp.float32),
               pltpu.VMEM((t_out, tB, HP), jnp.float32)]

    return pl.pallas_call(
        _predictor_kernel,
        grid=grid, in_specs=in_specs, out_specs=out_specs, out_shape=out_shape,
        scratch_shapes=scratch, compiler_params=_compiler_params(),
    )(inp_t, mask_t, h0p, c0p, w_in, w_ih, w_hh, bias, w_out, b_out)


def _corrector_time_major(x_t, pred_t, hidden, lengths, p, no_clamp):
    """CorrectorLSTM + (pred + correct_amount).clamp(0,1), fused.  Time-major I/O.
    x_t: (t_out, B, Dc) corrector input (= predictor hidden when feed_input=False)."""
    h0, c0 = hidden
    t_out, B, Dc = x_t.shape
    H = h0.shape[-1]
    O = p["w_out"].shape[1]
    HP = _round_up(H, LANE)

    mask_t = _time_mask(lengths, t_out)
    h0p = _pad_cols(h0[0], H, HP)
    c0p = _pad_cols(c0[0], H, HP)
    w_ih = _pad_gate_cols(p["w_ih"], H, HP)
    w_hh = _pad_rows(_pad_gate_cols(p["w_hh"], H, HP), H, HP)
    bias = _pad_gate_cols(p["b_ih"] + p["b_hh"], H, HP)
    w_out = _pad_rows(p["w_out"], H, HP)
    b_out = p["b_out"].astype(jnp.float32)

    per_row = 4 * (2 * (t_out * (Dc + 1 + 2 * O + H) + 2 * HP) + t_out * 5 * HP)
    fixed = 4 * 2 * ((Dc + HP) * 4 * HP + 4 * HP + HP * O + O)
    tB = _pick_batch_tile(B, per_row, fixed)
    grid = (pl.cdiv(B, tB),)

    in_specs = [
        pl.BlockSpec((t_out, tB, Dc), lambda b: (0, b, 0)),
        pl.BlockSpec((t_out, tB, O), lambda b: (0, b, 0)),
        pl.BlockSpec((t_out, tB, 1), lambda b: (0, b, 0)),
        pl.BlockSpec((tB, HP), lambda b: (b, 0)),
        pl.BlockSpec((tB, HP), lambda b: (b, 0)),
        _full_spec(w_ih), _full_spec(w_hh), _full_spec(bias),
        _full_spec(w_out), _full_spec(b_out),
    ]
    out_specs = (
        pl.BlockSpec((t_out, tB, O), lambda b: (0, b, 0)),
        pl.BlockSpec((t_out, tB, H), lambda b: (0, b, 0)),
    )
    out_shape = (
        jax.ShapeDtypeStruct((t_out, B, O), jnp.float32),
        jax.ShapeDtypeStruct((t_out, B, H), jnp.float32),
    )
    scratch = [pltpu.VMEM((t_out, tB, 4 * HP), jnp.float32),
               pltpu.VMEM((t_out, tB, HP), jnp.float32)]

    return pl.pallas_call(
        _make_corrector_kernel(apply_clamp=not no_clamp),
        grid=grid, in_specs=in_specs, out_specs=out_specs, out_shape=out_shape,
        scratch_shapes=scratch, compiler_params=_compiler_params(),
    )(x_t, pred_t, mask_t, h0p, c0p, w_ih, w_hh, bias, w_out, b_out)


# ----------------------------- public forward --------------------------------

def predictor_lstm_forward(inp, hidden, lengths, params):
    """PredictorLSTM.forward: returns batch_first (prediction, hidden, embedding)."""
    pred_t, hid_t, emb_t = _predictor_time_major(inp, hidden, lengths, params)
    return (jnp.transpose(pred_t, (1, 0, 2)),
            jnp.transpose(hid_t, (1, 0, 2)),
            jnp.transpose(emb_t, (1, 0, 2)))


def masked_bce_loss(pred, target, lengths, use_mse=False, eps=1e-7):
    """Masked BCE / MSE averaged over valid (t < lengths[b]) elements.
    TODO(synk): masked_bce_loss is an external helper not included in the spec;
    this is the standard masked-mean formulation (plain JAX, not a kernel)."""
    B, T, _ = pred.shape
    m = (jnp.arange(T)[None, :, None]
         < jnp.asarray(lengths, jnp.int32)[:, None, None]).astype(pred.dtype)
    if use_mse:
        per = (pred - target) ** 2
    else:
        p = jnp.clip(pred, eps, 1.0 - eps)
        per = -(target * jnp.log(p) + (1.0 - target) * jnp.log1p(-p))
    denom = jnp.maximum(jnp.sum(m) * pred.shape[-1], 1.0)
    return jnp.sum(per * m) / denom


def self_correct_lstm_forward(input_seq, input_len, trg_seq, hidden, run_mode,
                              predictor_params, corrector_params,
                              *, no_clamp=False, use_mse=False):
    """SelfCorrectLSTM.forward (rnn_type='LSTM', feed_input=False,
    feed_input_and_hidden=False, use_corrector_control=False).
    Returns (loss, pred) batch_first, like the torch module."""
    pred_t, hid_t, _emb_t = _predictor_time_major(input_seq, hidden, input_len,
                                                  predictor_params)
    if run_mode != "train_corrector":
        pred = jnp.transpose(pred_t, (1, 0, 2))
        return masked_bce_loss(pred, trg_seq, input_len), pred
    # corrector_inp = hidden_predictor; hidden_corrector = hidden.clone()
    pred2_t, _hid_c_t = _corrector_time_major(hid_t, pred_t, hidden, input_len,
                                              corrector_params, no_clamp)
    pred2 = jnp.transpose(pred2_t, (1, 0, 2))
    return masked_bce_loss(pred2, trg_seq, input_len, use_mse=use_mse), pred2


# ------------------------- pure-JAX reference path ---------------------------

def _reference_lstm(x, h, c, w_ih, w_hh, bias, lengths, t_out):
    hp = lax.Precision.HIGHEST
    B = x.shape[0]
    H = h.shape[-1]
    len_arr = jnp.asarray(lengths, jnp.int32).reshape(B, 1)
    hs = []
    for t in range(t_out):
        gates = (jnp.dot(x[:, t, :], w_ih, precision=hp)
                 + jnp.dot(h, w_hh, precision=hp) + bias)
        i_g = jax.nn.sigmoid(gates[:, 0:H])
        f_g = jax.nn.sigmoid(gates[:, H:2 * H])
        g_g = jnp.tanh(gates[:, 2 * H:3 * H])
        o_g = jax.nn.sigmoid(gates[:, 3 * H:4 * H])
        c = f_g * c + i_g * g_g
        h = o_g * jnp.tanh(c)
        hs.append(h * (t < len_arr).astype(jnp.float32))
    return jnp.stack(hs, axis=1)


def reference_predictor(inp, hidden, lengths, p):
    hp = lax.Precision.HIGHEST
    t_out = int(max(lengths))
    emb = jnp.einsum("btd,de->bte", inp, p["w_in"], precision=hp)
    hid = _reference_lstm(emb, hidden[0][0], hidden[1][0], p["w_ih"], p["w_hh"],
                          p["b_ih"] + p["b_hh"], lengths, t_out)
    pred = jax.nn.sigmoid(
        jnp.einsum("bth,ho->bto", hid, p["w_out"], precision=hp) + p["b_out"][None])
    return pred, hid, emb


def reference_self_correct(inp, lengths, trg, hidden, run_mode, pp, cp,
                           no_clamp=False, use_mse=False):
    hp = lax.Precision.HIGHEST
    pred, hid, _ = reference_predictor(inp, hidden, lengths, pp)
    if run_mode != "train_corrector":
        return masked_bce_loss(pred, trg, lengths), pred
    hid_c = _reference_lstm(hid, hidden[0][0], hidden[1][0], cp["w_ih"], cp["w_hh"],
                            cp["b_ih"] + cp["b_hh"], lengths, int(max(lengths)))
    correct = jnp.tanh(
        jnp.einsum("bth,ho->bto", hid_c, cp["w_out"], precision=hp) + cp["b_out"][None])
    pred2 = pred + correct
    if not no_clamp:
        pred2 = jnp.clip(pred2, 0.0, 1.0)
    return masked_bce_loss(pred2, trg, lengths, use_mse=use_mse), pred2


# ------------------------------ parameter init -------------------------------

def make_predictor_params(key, input_dim, embed_dim, hidden_dim, output_dim):
    ks = jax.random.split(key, 7)
    u = lambda k, shape, s: (jax.random.uniform(k, shape, jnp.float32) * 2.0 - 1.0) * s
    s_rnn = 1.0 / np.sqrt(hidden_dim)
    return {
        "w_in":  u(ks[0], (input_dim, embed_dim), 1.0 / np.sqrt(input_dim)),
        "w_ih":  u(ks[1], (embed_dim, 4 * hidden_dim), s_rnn),
        "w_hh":  u(ks[2], (hidden_dim, 4 * hidden_dim), s_rnn),
        "b_ih":  u(ks[3], (1, 4 * hidden_dim), s_rnn),
        "b_hh":  u(ks[4], (1, 4 * hidden_dim), s_rnn),
        # small proj_out init keeps sigmoid/BCE away from saturation so the
        # kernel-vs-reference comparison in the demo is numerically well conditioned.
        "w_out": u(ks[5], (hidden_dim, output_dim), 0.02),
        "b_out": u(ks[6], (1, output_dim), 0.02),
    }


def make_corrector_params(key, input_dim, hidden_dim, output_dim):
    ks = jax.random.split(key, 5)
    u = lambda k, shape, s: (jax.random.uniform(k, shape, jnp.float32) * 2.0 - 1.0) * s
    s_rnn = 1.0 / np.sqrt(hidden_dim)
    return {
        "w_ih":  u(ks[0], (input_dim, 4 * hidden_dim), s_rnn),
        "w_hh":  u(ks[1], (hidden_dim, 4 * hidden_dim), s_rnn),
        "b_ih":  u(ks[2], (1, 4 * hidden_dim), s_rnn),
        "b_hh":  u(ks[3], (1, 4 * hidden_dim), s_rnn),
        # mirrors CorrectorLSTM's init_weight_small / init_bias_zero options
        "w_out": u(ks[4], (hidden_dim, output_dim), 0.01),
        "b_out": jnp.zeros((1, output_dim), jnp.float32),
    }


# ----------------------------------- demo ------------------------------------

if __name__ == "__main__":
    B, T = 2, 10
    EVENT_INPUT_DIM, EMBED_DIM, HIDDEN_DIM, TARGET_DIM = 16, 32, 32, 8
    lengths = [8, 5]            # descending, as pack_padded_sequence requires
    t_out = int(max(lengths))

    key = jax.random.PRNGKey(0)
    k_inp, k_trg, k_h, k_c, k_pp, k_cp = jax.random.split(key, 6)
    inp = jax.random.normal(k_inp, (B, T, EVENT_INPUT_DIM), jnp.float32)
    trg = jax.random.bernoulli(k_trg, 0.5, (B, t_out, TARGET_DIM)).astype(jnp.float32)
    h0 = jax.random.uniform(k_h, (1, B, HIDDEN_DIM), jnp.float32, -0.1, 0.1)
    c0 = jax.random.uniform(k_c, (1, B, HIDDEN_DIM), jnp.float32, -0.1, 0.1)
    pred_params = make_predictor_params(k_pp, EVENT_INPUT_DIM, EMBED_DIM,
                                        HIDDEN_DIM, TARGET_DIM)
    corr_params = make_corrector_params(k_cp, HIDDEN_DIM, HIDDEN_DIM, TARGET_DIM)

    # ---- kernel path ----
    pred_k, hid_k, emb_k = predictor_lstm_forward(inp, (h0, c0), lengths, pred_params)
    loss_p, pred_p = self_correct_lstm_forward(inp, lengths, trg, (h0, c0),
                                               "train_predictor",
                                               pred_params, corr_params)
    loss_c, pred_c = self_correct_lstm_forward(inp, lengths, trg, (h0, c0),
                                               "train_corrector",
                                               pred_params, corr_params)
    jax.block_until_ready((pred_k, hid_k, emb_k, loss_p, pred_p, loss_c, pred_c))

    # ---- pure-JAX reference (HIGHEST precision) ----
    pred_r, hid_r, emb_r = reference_predictor(inp, (h0, c0), lengths, pred_params)
    loss_p_r, pred_p_r = reference_self_correct(inp, lengths, trg, (h0, c0),
                                                "train_predictor",
                                                pred_params, corr_params)
    loss_c_r, pred_c_r = reference_self_correct(inp, lengths, trg, (h0, c0),
                                                "train_corrector",
                                                pred_params, corr_params)

    assert pred_k.shape == (B, t_out, TARGET_DIM)
    assert hid_k.shape == (B, t_out, HIDDEN_DIM)
    assert emb_k.shape == (B, T, EMBED_DIM)
    assert pred_c.shape == (B, t_out, TARGET_DIM)
    np.testing.assert_allclose(np.asarray(emb_k), np.asarray(emb_r), rtol=3e-3, atol=3e-3)
    np.testing.assert_allclose(np.asarray(hid_k), np.asarray(hid_r), rtol=3e-3, atol=3e-3)
    np.testing.assert_allclose(np.asarray(pred_k), np.asarray(pred_r), rtol=3e-3, atol=3e-3)
    np.testing.assert_allclose(np.asarray(pred_p), np.asarray(pred_p_r), rtol=3e-3, atol=3e-3)
    np.testing.assert_allclose(np.asarray(pred_c), np.asarray(pred_c_r), rtol=5e-3, atol=5e-3)
    np.testing.assert_allclose(float(loss_p), float(loss_p_r), rtol=1e-2, atol=5e-3)
    np.testing.assert_allclose(float(loss_c), float(loss_c_r), rtol=1e-2, atol=5e-3)

    print("KERNEL_OK")
</pallas_src>

<mosaic_0001>
module attributes {stable_mosaic.version = 11 : i64} {
  func.func @_predictor_kernel(%arg0: i32, %arg1: memref<10x2x16xf32, #tpu.memory_space<vmem>>, %arg2: memref<8x2x1xf32, #tpu.memory_space<vmem>>, %arg3: memref<2x128xf32, #tpu.memory_space<vmem>>, %arg4: memref<2x128xf32, #tpu.memory_space<vmem>>, %arg5: memref<16x32xf32, #tpu.memory_space<vmem>>, %arg6: memref<32x512xf32, #tpu.memory_space<vmem>>, %arg7: memref<128x512xf32, #tpu.memory_space<vmem>>, %arg8: memref<1x512xf32, #tpu.memory_space<vmem>>, %arg9: memref<128x8xf32, #tpu.memory_space<vmem>>, %arg10: memref<1x8xf32, #tpu.memory_space<vmem>>, %arg11: memref<8x2x8xf32, #tpu.memory_space<vmem>>, %arg12: memref<8x2x32xf32, #tpu.memory_space<vmem>>, %arg13: memref<10x2x32xf32, #tpu.memory_space<vmem>>, %arg14: memref<8x2x512xf32, #tpu.memory_space<vmem>>, %arg15: memref<8x2x128xf32, #tpu.memory_space<vmem>>) attributes {dimension_semantics = [#tpu.dimension_semantics<parallel>], iteration_bounds = array<i64: 1>, scalar_prefetch = 0 : i64, scratch_operands = 2 : i64, tpu.core_type = #tpu.core_type<tc>, window_params = [{transform_indices = @transform_0, window_bounds = array<i64: 10, 2, 16>}, {transform_indices = @transform_1, window_bounds = array<i64: 8, 2, 1>}, {transform_indices = @transform_2, window_bounds = array<i64: 2, 128>}, {transform_indices = @transform_3, window_bounds = array<i64: 2, 128>}, {pipeline_mode = #tpu.pipeline_mode<synchronous>, transform_indices = @transform_4, window_bounds = array<i64: 16, 32>}, {pipeline_mode = #tpu.pipeline_mode<synchronous>, transform_indices = @transform_5, window_bounds = array<i64: 32, 512>}, {pipeline_mode = #tpu.pipeline_mode<synchronous>, transform_indices = @transform_6, window_bounds = array<i64: 128, 512>}, {pipeline_mode = #tpu.pipeline_mode<synchronous>, transform_indices = @transform_7, window_bounds = array<i64: 1, 512>}, {pipeline_mode = #tpu.pipeline_mode<synchronous>, transform_indices = @transform_8, window_bounds = array<i64: 128, 8>}, {pipeline_mode = #tpu.pipeline_mode<synchronous>, transform_indices = @transform_9, window_bounds = array<i64: 1, 8>}, {transform_indices = @transform_10, window_bounds = array<i64: 8, 2, 8>}, {transform_indices = @transform_11, window_bounds = array<i64: 8, 2, 32>}, {transform_indices = @transform_12, window_bounds = array<i64: 10, 2, 32>}]} {
    %c0 = arith.constant 0 : index
    %c0_0 = arith.constant 0 : index
    %c0_1 = arith.constant 0 : index
    %0 = vector.load %arg1[%c0, %c0_0, %c0_1] : memref<10x2x16xf32, #tpu.memory_space<vmem>>, vector<10x2x16xf32>
    %1 = vector.shape_cast %0 : vector<10x2x16xf32> to vector<20x16xf32>
    %c0_2 = arith.constant 0 : index
    %c0_3 = arith.constant 0 : index
    %2 = vector.load %arg5[%c0_2, %c0_3] : memref<16x32xf32, #tpu.memory_space<vmem>>, vector<16x32xf32>
    %cst = arith.constant dense<0.000000e+00> : vector<20x32xf32>
    %3 = tpu.matmul %1, %2, %cst {dimension_numbers = #tpu.dot_dimension_numbers<[1], [0], [0], [1], [0, 0, 1, 1], [], []>} : vector<20x16xf32>, vector<16x32xf32>, vector<20x32xf32> -> vector<20x32xf32>
    %4 = vector.shape_cast %3 : vector<20x32xf32> to vector<10x2x32xf32>
    %c0_4 = arith.constant 0 : index
    %c0_5 = arith.constant 0 : index
    %c0_6 = arith.constant 0 : index
    %5 = vector.load %arg13[%c0_4, %c0_5, %c0_6] : memref<10x2x32xf32, #tpu.memory_space<vmem>>, vector<10x2x32xf32>
    tpu.vector_store %arg13[%c0_4, %c0_5, %c0_6], %4 {strides = array<i32>} : memref<10x2x32xf32, #tpu.memory_space<vmem>>, vector<10x2x32xf32>,
    %6 = vector.extract_strided_slice %3 {offsets = [0, 0], sizes = [16, 32], strides = [1, 1]} : vector<20x32xf32> to vector<16x32xf32>
    %c0_7 = arith.constant 0 : index
    %c0_8 = arith.constant 0 : index
    %7 = vector.load %arg6[%c0_7, %c0_8] : memref<32x512xf32, #tpu.memory_space<vmem>>, vector<32x512xf32>
    %cst_9 = arith.constant dense<0.000000e+00> : vector<16x512xf32>
    %8 = tpu.matmul %6, %7, %cst_9 {dimension_numbers = #tpu.dot_dimension_numbers<[1], [0], [0], [1], [0, 0, 1, 1], [], []>} : vector<16x32xf32>, vector<32x512xf32>, vector<16x512xf32> -> vector<16x512xf32>
    %c0_10 = arith.constant 0 : index
    %c0_11 = arith.constant 0 : index
    %9 = vector.load %arg8[%c0_10, %c0_11] : memref<1x512xf32, #tpu.memory_space<vmem>>, vector<1x512xf32>
    %10 = vector.broadcast %9 : vector<1x512xf32> to vector<16x512xf32>
    %11 = arith.addf %8, %10 : vector<16x512xf32>
    %12 = vector.shape_cast %11 : vector<16x512xf32> to vector<8x2x512xf32>
    %c0_12 = arith.constant 0 : index
    %c0_13 = arith.constant 0 : index
    %c0_14 = arith.constant 0 : index
    %13 = vector.load %arg14[%c0_12, %c0_13, %c0_14] : memref<8x2x512xf32, #tpu.memory_space<vmem>>, vector<8x2x512xf32>
    tpu.vector_store %arg14[%c0_12, %c0_13, %c0_14], %12 {strides = array<i32>} : memref<8x2x512xf32, #tpu.memory_space<vmem>>, vector<8x2x512xf32>,
    %c0_15 = arith.constant 0 : index
    %c0_16 = arith.constant 0 : index
    %14 = vector.load %arg3[%c0_15, %c0_16] : memref<2x128xf32, #tpu.memory_space<vmem>>, vector<2x128xf32>
    %c0_17 = arith.constant 0 : index
    %c0_18 = arith.constant 0 : index
    %15 = vector.load %arg4[%c0_17, %c0_18] : memref<2x128xf32, #tpu.memory_space<vmem>>, vector<2x128xf32>
    %c0_19 = arith.constant 0 : index
    %c0_20 = arith.constant 0 : index
    %16 = vector.load %arg7[%c0_19, %c0_20] : memref<128x512xf32, #tpu.memory_space<vmem>>, vector<128x512xf32>
    %c0_21 = arith.constant 0 : index
    %c0_22 = arith.constant 0 : index
    %c0_23 = arith.constant 0 : index
    %17 = vector.load %arg14[%c0_21, %c0_22, %c0_23] : memref<8x2x512xf32, #tpu.memory_space<vmem>>, vector<1x2x512xf32>
    %18 = vector.shape_cast %17 : vector<1x2x512xf32> to vector<2x512xf32>
    %cst_24 = arith.constant dense<0.000000e+00> : vector<2x512xf32>
    %19 = tpu.matmul %14, %16, %cst_24 {dimension_numbers = #tpu.dot_dimension_numbers<[1], [0], [0], [1], [0, 0, 1, 1], [], []>} : vector<2x128xf32>, vector<128x512xf32>, vector<2x512xf32> -> vector<2x512xf32>
    %20 = arith.addf %18, %19 : vector<2x512xf32>
    %21 = vector.extract_strided_slice %20 {offsets = [0, 0], sizes = [2, 128], strides = [1, 1]} : vector<2x512xf32> to vector<2x128xf32>
    %22 = arith.negf %21 : vector<2x128xf32>
    %23 = math.exp %22 : vector<2x128xf32>
    %cst_25 = arith.constant 1.000000e+00 : f32
    %24 = vector.broadcast %cst_25 : f32 to vector<2x128xf32>
    %25 = arith.addf %24, %23 : vector<2x128xf32>
    %26 = arith.divf %24, %25 : vector<2x128xf32>
    %27 = vector.extract_strided_slice %20 {offsets = [0, 128], sizes = [2, 128], strides = [1, 1]} : vector<2x512xf32> to vector<2x128xf32>
    %28 = arith.negf %27 : vector<2x128xf32>
    %29 = math.exp %28 : vector<2x128xf32>
    %cst_26 = arith.constant 1.000000e+00 : f32
    %30 = vector.broadcast %cst_26 : f32 to vector<2x128xf32>
    %31 = arith.addf %30, %29 : vector<2x128xf32>
    %32 = arith.divf %30, %31 : vector<2x128xf32>
    %33 = vector.extract_strided_slice %20 {offsets = [0, 256], sizes = [2, 128], strides = [1, 1]} : vector<2x512xf32> to vector<2x128xf32>
    %34 = math.tanh %33 : vector<2x128xf32>
    %35 = vector.extract_strided_slice %20 {offsets = [0, 384], sizes = [2, 128], strides = [1, 1]} : vector<2x512xf32> to vector<2x128xf32>
    %36 = arith.negf %35 : vector<2x128xf32>
    %37 = math.exp %36 : vector<2x128xf32>
    %cst_27 = arith.constant 1.000000e+00 : f32
    %38 = vector.broadcast %cst_27 : f32 to vector<2x128xf32>
    %39 = arith.addf %38, %37 : vector<2x128xf32>
    %40 = arith.divf %38, %39 : vector<2x128xf32>
    %41 = arith.mulf %32, %15 : vector<2x128xf32>
    %42 = arith.mulf %26, %34 : vector<2x128xf32>
    %43 = arith.addf %41, %42 : vector<2x128xf32>
    %44 = math.tanh %43 : vector<2x128xf32>
    %45 = arith.mulf %40, %44 : vector<2x128xf32>
    %c0_28 = arith.constant 0 : index
    %c0_29 = arith.constant 0 : index
    %c0_30 = arith.constant 0 : index
    %46 = vector.load %arg2[%c0_28, %c0_29, %c0_30] : memref<8x2x1xf32, #tpu.memory_space<vmem>>, vector<1x2x1xf32>
    %47 = vector.shape_cast %46 : vector<1x2x1xf32> to vector<2x1xf32>
    %48 = vector.broadcast %47 : vector<2x1xf32> to vector<2x128xf32>
    %49 = arith.mulf %45, %48 : vector<2x128xf32>
    %c0_31 = arith.constant 0 : index
    %c0_32 = arith.constant 0 : index
    %c0_33 = arith.constant 0 : index
    %50 = vector.load %arg15[%c0_31, %c0_32, %c0_33] : memref<8x2x128xf32, #tpu.memory_space<vmem>>, vector<1x2x128xf32>
    %51 = vector.shape_cast %50 : vector<1x2x128xf32> to vector<2x128xf32>
    %52 = vector.shape_cast %49 : vector<2x128xf32> to vector<1x2x128xf32>
    tpu.vector_store %arg15[%c0_31, %c0_32, %c0_33], %52 {strides = array<i32>} : memref<8x2x128xf32, #tpu.memory_space<vmem>>, vector<1x2x128xf32>,
    %c1 = arith.constant 1 : index
    %c0_34 = arith.constant 0 : index
    %c0_35 = arith.constant 0 : index
    %53 = vector.load %arg14[%c1, %c0_34, %c0_35] : memref<8x2x512xf32, #tpu.memory_space<vmem>>, vector<1x2x512xf32>
    %54 = vector.shape_cast %53 : vector<1x2x512xf32> to vector<2x512xf32>
    %cst_36 = arith.constant dense<0.000000e+00> : vector<2x512xf32>
    %55 = tpu.matmul %45, %16, %cst_36 {dimension_numbers = #tpu.dot_dimension_numbers<[1], [0], [0], [1], [0, 0, 1, 1], [], []>} : vector<2x128xf32>, vector<128x512xf32>, vector<2x512xf32> -> vector<2x512xf32>
    %56 = arith.addf %54, %55 : vector<2x512xf32>
    %57 = vector.extract_strided_slice %56 {offsets = [0, 0], sizes = [2, 128], strides = [1, 1]} : vector<2x512xf32> to vector<2x128xf32>
    %58 = arith.negf %57 : vector<2x128xf32>
    %59 = math.exp %58 : vector<2x128xf32>
    %cst_37 = arith.constant 1.000000e+00 : f32
    %60 = vector.broadcast %cst_37 : f32 to vector<2x128xf32>
    %61 = arith.addf %60, %59 : vector<2x128xf32>
    %62 = arith.divf %60, %61 : vector<2x128xf32>
    %63 = vector.extract_strided_slice %56 {offsets = [0, 128], sizes = [2, 128], strides = [1, 1]} : vector<2x512xf32> to vector<2x128xf32>
    %64 = arith.negf %63 : vector<2x128xf32>
    %65 = math.exp %64 : vector<2x128xf32>
    %cst_38 = arith.constant 1.000000e+00 : f32
    %66 = vector.broadcast %cst_38 : f32 to vector<2x128xf32>
    %67 = arith.addf %66, %65 : vector<2x128xf32>
    %68 = arith.divf %66, %67 : vector<2x128xf32>
    %69 = vector.extract_strided_slice %56 {offsets = [0, 256], sizes = [2, 128], strides = [1, 1]} : vector<2x512xf32> to vector<2x128xf32>
    %70 = math.tanh %69 : vector<2x128xf32>
    %71 = vector.extract_strided_slice %56 {offsets = [0, 384], sizes = [2, 128], strides = [1, 1]} : vector<2x512xf32> to vector<2x128xf32>
    %72 = arith.negf %71 : vector<2x128xf32>
    %73 = math.exp %72 : vector<2x128xf32>
    %cst_39 = arith.constant 1.000000e+00 : f32
    %74 = vector.broadcast %cst_39 : f32 to vector<2x128xf32>
    %75 = arith.addf %74, %73 : vector<2x128xf32>
    %76 = arith.divf %74, %75 : vector<2x128xf32>
    %77 = arith.mulf %68, %43 : vector<2x128xf32>
    %78 = arith.mulf %62, %70 : vector<2x128xf32>
    %79 = arith.addf %77, %78 : vector<2x128xf32>
    %80 = math.tanh %79 : vector<2x128xf32>
    %81 = arith.mulf %76, %80 : vector<2x128xf32>
    %c1_40 = arith.constant 1 : index
    %c0_41 = arith.constant 0 : index
    %c0_42 = arith.constant 0 : index
    %82 = vector.load %arg2[%c1_40, %c0_41, %c0_42] : memref<8x2x1xf32, #tpu.memory_space<vmem>>, vector<1x2x1xf32>
    %83 = vector.shape_cast %82 : vector<1x2x1xf32> to vector<2x1xf32>
    %84 = vector.broadcast %83 : vector<2x1xf32> to vector<2x128xf32>
    %85 = arith.mulf %81, %84 : vector<2x128xf32>
    %c1_43 = arith.constant 1 : index
    %c0_44 = arith.constant 0 : index
    %c0_45 = arith.constant 0 : index
    %86 = vector.load %arg15[%c1_43, %c0_44, %c0_45] : memref<8x2x128xf32, #tpu.memory_space<vmem>>, vector<1x2x128xf32>
    %87 = vector.shape_cast %86 : vector<1x2x128xf32> to vector<2x128xf32>
    %88 = vector.shape_cast %85 : vector<2x128xf32> to vector<1x2x128xf32>
    tpu.vector_store %arg15[%c1_43, %c0_44, %c0_45], %88 {strides = array<i32>} : memref<8x2x128xf32, #tpu.memory_space<vmem>>, vector<1x2x128xf32>,
    %c2 = arith.constant 2 : index
    %c0_46 = arith.constant 0 : index
    %c0_47 = arith.constant 0 : index
    %89 = vector.load %arg14[%c2, %c0_46, %c0_47] : memref<8x2x512xf32, #tpu.memory_space<vmem>>, vector<1x2x512xf32>
    %90 = vector.shape_cast %89 : vector<1x2x512xf32> to vector<2x512xf32>
    %cst_48 = arith.constant dense<0.000000e+00> : vector<2x512xf32>
    %91 = tpu.matmul %81, %16, %cst_48 {dimension_numbers = #tpu.dot_dimension_numbers<[1], [0], [0], [1], [0, 0, 1, 1], [], []>} : vector<2x128xf32>, vector<128x512xf32>, vector<2x512xf32> -> vector<2x512xf32>
    %92 = arith.addf %90, %91 : vector<2x512xf32>
    %93 = vector.extract_strided_slice %92 {offsets = [0, 0], sizes = [2, 128], strides = [1, 1]} : vector<2x512xf32> to vector<2x128xf32>
    %94 = arith.negf %93 : vector<2x128xf32>
    %95 = math.exp %94 : vector<2x128xf32>
    %cst_49 = arith.constant 1.000000e+00 : f32
    %96 = vector.broadcast %cst_49 : f32 to vector<2x128xf32>
    %97 = arith.addf %96, %95 : vector<2x128xf32>
    %98 = arith.divf %96, %97 : vector<2x128xf32>
    %99 = vector.extract_strided_slice %92 {offsets = [0, 128], sizes = [2, 128], strides = [1, 1]} : vector<2x512xf32> to vector<2x128xf32>
    %100 = arith.negf %99 : vector<2x128xf32>
    %101 = math.exp %100 : vector<2x128xf32>
    %cst_50 = arith.constant 1.000000e+00 : f32
    %102 = vector.broadcast %cst_50 : f32 to vector<2x128xf32>
    %103 = arith.addf %102, %101 : vector<2x128xf32>
    %104 = arith.divf %102, %103 : vector<2x128xf32>
    %105 = vector.extract_strided_slice %92 {offsets = [0, 256], sizes = [2, 128], strides = [1, 1]} : vector<2x512xf32> to vector<2x128xf32>
    %106 = math.tanh %105 : vector<2x128xf32>
    %107 = vector.extract_strided_slice %92 {offsets = [0, 384], sizes = [2, 128], strides = [1, 1]} : vector<2x512xf32> to vector<2x128xf32>
    %108 = arith.negf %107 : vector<2x128xf32>
    %109 = math.exp %108 : vector<2x128xf32>
    %cst_51 = arith.constant 1.000000e+00 : f32
    %110 = vector.broadcast %cst_51 : f32 to vector<2x128xf32>
    %111 = arith.addf %110, %109 : vector<2x128xf32>
    %112 = arith.divf %110, %111 : vector<2x128xf32>
    %113 = arith.mulf %104, %79 : vector<2x128xf32>
    %114 = arith.mulf %98, %106 : vector<2x128xf32>
    %115 = arith.addf %113, %114 : vector<2x128xf32>
    %116 = math.tanh %115 : vector<2x128xf32>
    %117 = arith.mulf %112, %116 : vector<2x128xf32>
    %c2_52 = arith.constant 2 : index
    %c0_53 = arith.constant 0 : index
    %c0_54 = arith.constant 0 : index
    %118 = vector.load %arg2[%c2_52, %c0_53, %c0_54] : memref<8x2x1xf32, #tpu.memory_space<vmem>>, vector<1x2x1xf32>
    %119 = vector.shape_cast %118 : vector<1x2x1xf32> to vector<2x1xf32>
    %120 = vector.broadcast %119 : vector<2x1xf32> to vector<2x128xf32>
    %121 = arith.mulf %117, %120 : vector<2x128xf32>
    %c2_55 = arith.constant 2 : index
    %c0_56 = arith.constant 0 : index
    %c0_57 = arith.constant 0 : index
    %122 = vector.load %arg15[%c2_55, %c0_56, %c0_57] : memref<8x2x128xf32, #tpu.memory_space<vmem>>, vector<1x2x128xf32>
    %123 = vector.shape_cast %122 : vector<1x2x128xf32> to vector<2x128xf32>
    %124 = vector.shape_cast %121 : vector<2x128xf32> to vector<1x2x128xf32>
    tpu.vector_store %arg15[%c2_55, %c0_56, %c0_57], %124 {strides = array<i32>} : memref<8x2x128xf32, #tpu.memory_space<vmem>>, vector<1x2x128xf32>,
    %c3 = arith.constant 3 : index
    %c0_58 = arith.constant 0 : index
    %c0_59 = arith.constant 0 : index
    %125 = vector.load %arg14[%c3, %c0_58, %c0_59] : memref<8x2x512xf32, #tpu.memory_space<vmem>>, vector<1x2x512xf32>
    %126 = vector.shape_cast %125 : vector<1x2x512xf32> to vector<2x512xf32>
    %cst_60 = arith.constant dense<0.000000e+00> : vector<2x512xf32>
    %127 = tpu.matmul %117, %16, %cst_60 {dimension_numbers = #tpu.dot_dimension_numbers<[1], [0], [0], [1], [0, 0, 1, 1], [], []>} : vector<2x128xf32>, vector<128x512xf32>, vector<2x512xf32> -> vector<2x512xf32>
    %128 = arith.addf %126, %127 : vector<2x512xf32>
    %129 = vector.extract_strided_slice %128 {offsets = [0, 0], sizes = [2, 128], strides = [1, 1]} : vector<2x512xf32> to vector<2x128xf32>
    %130 = arith.negf %129 : vector<2x128xf32>
    %131 = math.exp %130 : vector<2x128xf32>
    %cst_61 = arith.constant 1.000000e+00 : f32
    %132 = vector.broadcast %cst_61 : f32 to vector<2x128xf32>
    %133 = arith.addf %132, %131 : vector<2x128xf32>
    %134 = arith.divf %132, %133 : vector<2x128xf32>
    %135 = vector.extract_strided_slice %128 {offsets = [0, 128], sizes = [2, 128], strides = [1, 1]} : vector<2x512xf32> to vector<2x128xf32>
    %136 = arith.negf %135 : vector<2x128xf32>
    %137 = math.exp %136 : vector<2x128xf32>
    %cst_62 = arith.constant 1.000000e+00 : f32
    %138 = vector.broadcast %cst_62 : f32 to vector<2x128xf32>
    %139 = arith.addf %138, %137 : vector<2x128xf32>
    %140 = arith.divf %138, %139 : vector<2x128xf32>
    %141 = vector.extract_strided_slice %128 {offsets = [0, 256], sizes = [2, 128], strides = [1, 1]} : vector<2x512xf32> to vector<2x128xf32>
    %142 = math.tanh %141 : vector<2x128xf32>
    %143 = vector.extract_strided_slice %128 {offsets = [0, 384], sizes = [2, 128], strides = [1, 1]} : vector<2x512xf32> to vector<2x128xf32>
    %144 = arith.negf %143 : vector<2x128xf32>
    %145 = math.exp %144 : vector<2x128xf32>
    %cst_63 = arith.constant 1.000000e+00 : f32
    %146 = vector.broadcast %cst_63 : f32 to vector<2x128xf32>
    %147 = arith.addf %146, %145 : vector<2x128xf32>
    %148 = arith.divf %146, %147 : vector<2x128xf32>
    %149 = arith.mulf %140, %115 : vector<2x128xf32>
    %150 = arith.mulf %134, %142 : vector<2x128xf32>
    %151 = arith.addf %149, %150 : vector<2x128xf32>
    %152 = math.tanh %151 : vector<2x128xf32>
    %153 = arith.mulf %148, %152 : vector<2x128xf32>
    %c3_64 = arith.constant 3 : index
    %c0_65 = arith.constant 0 : index
    %c0_66 = arith.constant 0 : index
    %154 = vector.load %arg2[%c3_64, %c0_65, %c0_66] : memref<8x2x1xf32, #tpu.memory_space<vmem>>, vector<1x2x1xf32>
    %155 = vector.shape_cast %154 : vector<1x2x1xf32> to vector<2x1xf32>
    %156 = vector.broadcast %155 : vector<2x1xf32> to vector<2x128xf32>
    %157 = arith.mulf %153, %156 : vector<2x128xf32>
    %c3_67 = arith.constant 3 : index
    %c0_68 = arith.constant 0 : index
    %c0_69 = arith.constant 0 : index
    %158 = vector.load %arg15[%c3_67, %c0_68, %c0_69] : memref<8x2x128xf32, #tpu.memory_space<vmem>>, vector<1x2x128xf32>
    %159 = vector.shape_cast %158 : vector<1x2x128xf32> to vector<2x128xf32>
    %160 = vector.shape_cast %157 : vector<2x128xf32> to vector<1x2x128xf32>
    tpu.vector_store %arg15[%c3_67, %c0_68, %c0_69], %160 {strides = array<i32>} : memref<8x2x128xf32, #tpu.memory_space<vmem>>, vector<1x2x128xf32>,
    %c4 = arith.constant 4 : index
    %c0_70 = arith.constant 0 : index
    %c0_71 = arith.constant 0 : index
    %161 = vector.load %arg14[%c4, %c0_70, %c0_71] : memref<8x2x512xf32, #tpu.memory_space<vmem>>, vector<1x2x512xf32>
    %162 = vector.shape_cast %161 : vector<1x2x512xf32> to vector<2x512xf32>
    %cst_72 = arith.constant dense<0.000000e+00> : vector<2x512xf32>
    %163 = tpu.matmul %153, %16, %cst_72 {dimension_numbers = #tpu.dot_dimension_numbers<[1], [0], [0], [1], [0, 0, 1, 1], [], []>} : vector<2x128xf32>, vector<128x512xf32>, vector<2x512xf32> -> vector<2x512xf32>
    %164 = arith.addf %162, %163 : vector<2x512xf32>
    %165 = vector.extract_strided_slice %164 {offsets = [0, 0], sizes = [2, 128], strides = [1, 1]} : vector<2x512xf32> to vector<2x128xf32>
    %166 = arith.negf %165 : vector<2x128xf32>
    %167 = math.exp %166 : vector<2x128xf32>
    %cst_73 = arith.constant 1.000000e+00 : f32
    %168 = vector.broadcast %cst_73 : f32 to vector<2x128xf32>
    %169 = arith.addf %168, %167 : vector<2x128xf32>
    %170 = arith.divf %168, %169 : vector<2x128xf32>
    %171 = vector.extract_strided_slice %164 {offsets = [0, 128], sizes = [2, 128], strides = [1, 1]} : vector<2x512xf32> to vector<2x128xf32>
    %172 = arith.negf %171 : vector<2x128xf32>
    %173 = math.exp %172 : vector<2x128xf32>
    %cst_74 = arith.constant 1.000000e+00 : f32
    %174 = vector.broadcast %cst_74 : f32 to vector<2x128xf32>
    %175 = arith.addf %174, %173 : vector<2x128xf32>
    %176 = arith.divf %174, %175 : vector<2x128xf32>
    %177 = vector.extract_strided_slice %164 {offsets = [0, 256], sizes = [2, 128], strides = [1, 1]} : vector<2x512xf32> to vector<2x128xf32>
    %178 = math.tanh %177 : vector<2x128xf32>
    %179 = vector.extract_strided_slice %164 {offsets = [0, 384], sizes = [2, 128], strides = [1, 1]} : vector<2x512xf32> to vector<2x128xf32>
    %180 = arith.negf %179 : vector<2x128xf32>
    %181 = math.exp %180 : vector<2x128xf32>
    %cst_75 = arith.constant 1.000000e+00 : f32
    %182 = vector.broadcast %cst_75 : f32 to vector<2x128xf32>
    %183 = arith.addf %182, %181 : vector<2x128xf32>
    %184 = arith.divf %182, %183 : vector<2x128xf32>
    %185 = arith.mulf %176, %151 : vector<2x128xf32>
    %186 = arith.mulf %170, %178 : vector<2x128xf32>
    %187 = arith.addf %185, %186 : vector<2x128xf32>
    %188 = math.tanh %187 : vector<2x128xf32>
    %189 = arith.mulf %184, %188 : vector<2x128xf32>
    %c4_76 = arith.constant 4 : index
    %c0_77 = arith.constant 0 : index
    %c0_78 = arith.constant 0 : index
    %190 = vector.load %arg2[%c4_76, %c0_77, %c0_78] : memref<8x2x1xf32, #tpu.memory_space<vmem>>, vector<1x2x1xf32>
    %191 = vector.shape_cast %190 : vector<1x2x1xf32> to vector<2x1xf32>
    %192 = vector.broadcast %191 : vector<2x1xf32> to vector<2x128xf32>
    %193 = arith.mulf %189, %192 : vector<2x128xf32>
    %c4_79 = arith.constant 4 : index
    %c0_80 = arith.constant 0 : index
    %c0_81 = arith.constant 0 : index
    %194 = vector.load %arg15[%c4_79, %c0_80, %c0_81] : memref<8x2x128xf32, #tpu.memory_space<vmem>>, vector<1x2x128xf32>
    %195 = vector.shape_cast %194 : vector<1x2x128xf32> to vector<2x128xf32>
    %196 = vector.shape_cast %193 : vector<2x128xf32> to vector<1x2x128xf32>
    tpu.vector_store %arg15[%c4_79, %c0_80, %c0_81], %196 {strides = array<i32>} : memref<8x2x128xf32, #tpu.memory_space<vmem>>, vector<1x2x128xf32>,
    %c5 = arith.constant 5 : index
    %c0_82 = arith.constant 0 : index
    %c0_83 = arith.constant 0 : index
    %197 = vector.load %arg14[%c5, %c0_82, %c0_83] : memref<8x2x512xf32, #tpu.memory_space<vmem>>, vector<1x2x512xf32>
    %198 = vector.shape_cast %197 : vector<1x2x512xf32> to vector<2x512xf32>
    %cst_84 = arith.constant dense<0.000000e+00> : vector<2x512xf32>
    %199 = tpu.matmul %189, %16, %cst_84 {dimension_numbers = #tpu.dot_dimension_numbers<[1], [0], [0], [1], [0, 0, 1, 1], [], []>} : vector<2x128xf32>, vector<128x512xf32>, vector<2x512xf32> -> vector<2x512xf32>
    %200 = arith.addf %198, %199 : vector<2x512xf32>
    %201 = vector.extract_strided_slice %200 {offsets = [0, 0], sizes = [2, 128], strides = [1, 1]} : vector<2x512xf32> to vector<2x128xf32>
    %202 = arith.negf %201 : vector<2x128xf32>
    %203 = math.exp %202 : vector<2x128xf32>
    %cst_85 = arith.constant 1.000000e+00 : f32
    %204 = vector.broadcast %cst_85 : f32 to vector<2x128xf32>
    %205 = arith.addf %204, %203 : vector<2x128xf32>
    %206 = arith.divf %204, %205 : vector<2x128xf32>
    %207 = vector.extract_strided_slice %200 {offsets = [0, 128], sizes = [2, 128], strides = [1, 1]} : vector<2x512xf32> to vector<2x128xf32>
    %208 = arith.negf %207 : vector<2x128xf32>
    %209 = math.exp %208 : vector<2x128xf32>
    %cst_86 = arith.constant 1.000000e+00 : f32
    %210 = vector.broadcast %cst_86 : f32 to vector<2x128xf32>
    %211 = arith.addf %210, %209 : vector<2x128xf32>
    %212 = arith.divf %210, %211 : vector<2x128xf32>
    %213 = vector.extract_strided_slice %200 {offsets = [0, 256], sizes = [2, 128], strides = [1, 1]} : vector<2x512xf32> to vector<2x128xf32>
    %214 = math.tanh %213 : vector<2x128xf32>
    %215 = vector.extract_strided_slice %200 {offsets = [0, 384], sizes = [2, 128], strides = [1, 1]} : vector<2x512xf32> to vector<2x128xf32>
    %216 = arith.negf %215 : vector<2x128xf32>
    %217 = math.exp %216 : vector<2x128xf32>
    %cst_87 = arith.constant 1.000000e+00 : f32
    %218 = vector.broadcast %cst_87 : f32 to vector<2x128xf32>
    %219 = arith.addf %218, %217 : vector<2x128xf32>
    %220 = arith.divf %218, %219 : vector<2x128xf32>
    %221 = arith.mulf %212, %187 : vector<2x128xf32>
    %222 = arith.mulf %206, %214 : vector<2x128xf32>
    %223 = arith.addf %221, %222 : vector<2x128xf32>
    %224 = math.tanh %223 : vector<2x128xf32>
    %225 = arith.mulf %220, %224 : vector<2x128xf32>
    %c5_88 = arith.constant 5 : index
    %c0_89 = arith.constant 0 : index
    %c0_90 = arith.constant 0 : index
    %226 = vector.load %arg2[%c5_88, %c0_89, %c0_90] : memref<8x2x1xf32, #tpu.memory_space<vmem>>, vector<1x2x1xf32>
    %227 = vector.shape_cast %226 : vector<1x2x1xf32> to vector<2x1xf32>
    %228 = vector.broadcast %227 : vector<2x1xf32> to vector<2x128xf32>
    %229 = arith.mulf %225, %228 : vector<2x128xf32>
    %c5_91 = arith.constant 5 : index
    %c0_92 = arith.constant 0 : index
    %c0_93 = arith.constant 0 : index
    %230 = vector.load %arg15[%c5_91, %c0_92, %c0_93] : memref<8x2x128xf32, #tpu.memory_space<vmem>>, vector<1x2x128xf32>
    %231 = vector.shape_cast %230 : vector<1x2x128xf32> to vector<2x128xf32>
    %232 = vector.shape_cast %229 : vector<2x128xf32> to vector<1x2x128xf32>
    tpu.vector_store %arg15[%c5_91, %c0_92, %c0_93], %232 {strides = array<i32>} : memref<8x2x128xf32, #tpu.memory_space<vmem>>, vector<1x2x128xf32>,
    %c6 = arith.constant 6 : index
    %c0_94 = arith.constant 0 : index
    %c0_95 = arith.constant 0 : index
    %233 = vector.load %arg14[%c6, %c0_94, %c0_95] : memref<8x2x512xf32, #tpu.memory_space<vmem>>, vector<1x2x512xf32>
    %234 = vector.shape_cast %233 : vector<1x2x512xf32> to vector<2x512xf32>
    %cst_96 = arith.constant dense<0.000000e+00> : vector<2x512xf32>
    %235 = tpu.matmul %225, %16, %cst_96 {dimension_numbers = #tpu.dot_dimension_numbers<[1], [0], [0], [1], [0, 0, 1, 1], [], []>} : vector<2x128xf32>, vector<128x512xf32>, vector<2x512xf32> -> vector<2x512xf32>
    %236 = arith.addf %234, %235 : vector<2x512xf32>
    %237 = vector.extract_strided_slice %236 {offsets = [0, 0], sizes = [2, 128], strides = [1, 1]} : vector<2x512xf32> to vector<2x128xf32>
    %238 = arith.negf %237 : vector<2x128xf32>
    %239 = math.exp %238 : vector<2x128xf32>
    %cst_97 = arith.constant 1.000000e+00 : f32
    %240 = vector.broadcast %cst_97 : f32 to vector<2x128xf32>
    %241 = arith.addf %240, %239 : vector<2x128xf32>
    %242 = arith.divf %240, %241 : vector<2x128xf32>
    %243 = vector.extract_strided_slice %236 {offsets = [0, 128], sizes = [2, 128], strides = [1, 1]} : vector<2x512xf32> to vector<2x128xf32>
    %244 = arith.negf %243 : vector<2x128xf32>
    %245 = math.exp %244 : vector<2x128xf32>
    %cst_98 = arith.constant 1.000000e+00 : f32
    %246 = vector.broadcast %cst_98 : f32 to vector<2x128xf32>
    %247 = arith.addf %246, %245 : vector<2x128xf32>
    %248 = arith.divf %246, %247 : vector<2x128xf32>
    %249 = vector.extract_strided_slice %236 {offsets = [0, 256], sizes = [2, 128], strides = [1, 1]} : vector<2x512xf32> to vector<2x128xf32>
    %250 = math.tanh %249 : vector<2x128xf32>
    %251 = vector.extract_strided_slice %236 {offsets = [0, 384], sizes = [2, 128], strides = [1, 1]} : vector<2x512xf32> to vector<2x128xf32>
    %252 = arith.negf %251 : vector<2x128xf32>
    %253 = math.exp %252 : vector<2x128xf32>
    %cst_99 = arith.constant 1.000000e+00 : f32
    %254 = vector.broadcast %cst_99 : f32 to vector<2x128xf32>
    %255 = arith.addf %254, %253 : vector<2x128xf32>
    %256 = arith.divf %254, %255 : vector<2x128xf32>
    %257 = arith.mulf %248, %223 : vector<2x128xf32>
    %258 = arith.mulf %242, %250 : vector<2x128xf32>
    %259 = arith.addf %257, %258 : vector<2x128xf32>
    %260 = math.tanh %259 : vector<2x128xf32>
    %261 = arith.mulf %256, %260 : vector<2x128xf32>
    %c6_100 = arith.constant 6 : index
    %c0_101 = arith.constant 0 : index
    %c0_102 = arith.constant 0 : index
    %262 = vector.load %arg2[%c6_100, %c0_101, %c0_102] : memref<8x2x1xf32, #tpu.memory_space<vmem>>, vector<1x2x1xf32>
    %263 = vector.shape_cast %262 : vector<1x2x1xf32> to vector<2x1xf32>
    %264 = vector.broadcast %263 : vector<2x1xf32> to vector<2x128xf32>
    %265 = arith.mulf %261, %264 : vector<2x128xf32>
    %c6_103 = arith.constant 6 : index
    %c0_104 = arith.constant 0 : index
    %c0_105 = arith.constant 0 : index
    %266 = vector.load %arg15[%c6_103, %c0_104, %c0_105] : memref<8x2x128xf32, #tpu.memory_space<vmem>>, vector<1x2x128xf32>
    %267 = vector.shape_cast %266 : vector<1x2x128xf32> to vector<2x128xf32>
    %268 = vector.shape_cast %265 : vector<2x128xf32> to vector<1x2x128xf32>
    tpu.vector_store %arg15[%c6_103, %c0_104, %c0_105], %268 {strides = array<i32>} : memref<8x2x128xf32, #tpu.memory_space<vmem>>, vector<1x2x128xf32>,
    %c7 = arith.constant 7 : index
    %c0_106 = arith.constant 0 : index
    %c0_107 = arith.constant 0 : index
    %269 = vector.load %arg14[%c7, %c0_106, %c0_107] : memref<8x2x512xf32, #tpu.memory_space<vmem>>, vector<1x2x512xf32>
    %270 = vector.shape_cast %269 : vector<1x2x512xf32> to vector<2x512xf32>
    %cst_108 = arith.constant dense<0.000000e+00> : vector<2x512xf32>
    %271 = tpu.matmul %261, %16, %cst_108 {dimension_numbers = #tpu.dot_dimension_numbers<[1], [0], [0], [1], [0, 0, 1, 1], [], []>} : vector<2x128xf32>, vector<128x512xf32>, vector<2x512xf32> -> vector<2x512xf32>
    %272 = arith.addf %270, %271 : vector<2x512xf32>
    %273 = vector.extract_strided_slice %272 {offsets = [0, 0], sizes = [2, 128], strides = [1, 1]} : vector<2x512xf32> to vector<2x128xf32>
    %274 = arith.negf %273 : vector<2x128xf32>
    %275 = math.exp %274 : vector<2x128xf32>
    %cst_109 = arith.constant 1.000000e+00 : f32
    %276 = vector.broadcast %cst_109 : f32 to vector<2x128xf32>
    %277 = arith.addf %276, %275 : vector<2x128xf32>
    %278 = arith.divf %276, %277 : vector<2x128xf32>
    %279 = vector.extract_strided_slice %272 {offsets = [0, 128], sizes = [2, 128], strides = [1, 1]} : vector<2x512xf32> to vector<2x128xf32>
    %280 = arith.negf %279 : vector<2x128xf32>
    %281 = math.exp %280 : vector<2x128xf32>
    %cst_110 = arith.constant 1.000000e+00 : f32
    %282 = vector.broadcast %cst_110 : f32 to vector<2x128xf32>
    %283 = arith.addf %282, %281 : vector<2x128xf32>
    %284 = arith.divf %282, %283 : vector<2x128xf32>
    %285 = vector.extract_strided_slice %272 {offsets = [0, 256], sizes = [2, 128], strides = [1, 1]} : vector<2x512xf32> to vector<2x128xf32>
    %286 = math.tanh %285 : vector<2x128xf32>
    %287 = vector.extract_strided_slice %272 {offsets = [0, 384], sizes = [2, 128], strides = [1, 1]} : vector<2x512xf32> to vector<2x128xf32>
    %288 = arith.negf %287 : vector<2x128xf32>
    %289 = math.exp %288 : vector<2x128xf32>
    %cst_111 = arith.constant 1.000000e+00 : f32
    %290 = vector.broadcast %cst_111 : f32 to vector<2x128xf32>
    %291 = arith.addf %290, %289 : vector<2x128xf32>
    %292 = arith.divf %290, %291 : vector<2x128xf32>
    %293 = arith.mulf %284, %259 : vector<2x128xf32>
    %294 = arith.mulf %278, %286 : vector<2x128xf32>
    %295 = arith.addf %293, %294 : vector<2x128xf32>
    %296 = math.tanh %295 : vector<2x128xf32>
    %297 = arith.mulf %292, %296 : vector<2x128xf32>
    %c7_112 = arith.constant 7 : index
    %c0_113 = arith.constant 0 : index
    %c0_114 = arith.constant 0 : index
    %298 = vector.load %arg2[%c7_112, %c0_113, %c0_114] : memref<8x2x1xf32, #tpu.memory_space<vmem>>, vector<1x2x1xf32>
    %299 = vector.shape_cast %298 : vector<1x2x1xf32> to vector<2x1xf32>
    %300 = vector.broadcast %299 : vector<2x1xf32> to vector<2x128xf32>
    %301 = arith.mulf %297, %300 : vector<2x128xf32>
    %c7_115 = arith.constant 7 : index
    %c0_116 = arith.constant 0 : index
    %c0_117 = arith.constant 0 : index
    %302 = vector.load %arg15[%c7_115, %c0_116, %c0_117] : memref<8x2x128xf32, #tpu.memory_space<vmem>>, vector<1x2x128xf32>
    %303 = vector.shape_cast %302 : vector<1x2x128xf32> to vector<2x128xf32>
    %304 = vector.shape_cast %301 : vector<2x128xf32> to vector<1x2x128xf32>
    tpu.vector_store %arg15[%c7_115, %c0_116, %c0_117], %304 {strides = array<i32>} : memref<8x2x128xf32, #tpu.memory_space<vmem>>, vector<1x2x128xf32>,
    %c0_118 = arith.constant 0 : index
    %c0_119 = arith.constant 0 : index
    %c0_120 = arith.constant 0 : index
    %305 = vector.load %arg15[%c0_118, %c0_119, %c0_120] : memref<8x2x128xf32, #tpu.memory_space<vmem>>, vector<8x2x128xf32>
    %306 = vector.extract_strided_slice %305 {offsets = [0, 0, 0], sizes = [8, 2, 32], strides = [1, 1, 1]} : vector<8x2x128xf32> to vector<8x2x32xf32>
    %c0_121 = arith.constant 0 : index
    %c0_122 = arith.constant 0 : index
    %c0_123 = arith.constant 0 : index
    %307 = vector.load %arg12[%c0_121, %c0_122, %c0_123] : memref<8x2x32xf32, #tpu.memory_space<vmem>>, vector<8x2x32xf32>
    tpu.vector_store %arg12[%c0_121, %c0_122, %c0_123], %306 {strides = array<i32>} : memref<8x2x32xf32, #tpu.memory_space<vmem>>, vector<8x2x32xf32>,
    %308 = vector.shape_cast %305 : vector<8x2x128xf32> to vector<16x128xf32>
    %c0_124 = arith.constant 0 : index
    %c0_125 = arith.constant 0 : index
    %309 = vector.load %arg9[%c0_124, %c0_125] : memref<128x8xf32, #tpu.memory_space<vmem>>, vector<128x8xf32>
    %cst_126 = arith.constant dense<0.000000e+00> : vector<16x8xf32>
    %310 = tpu.matmul %308, %309, %cst_126 {dimension_numbers = #tpu.dot_dimension_numbers<[1], [0], [0], [1], [0, 0, 1, 1], [], []>} : vector<16x128xf32>, vector<128x8xf32>, vector<16x8xf32> -> vector<16x8xf32>
    %c0_127 = arith.constant 0 : index
    %c0_128 = arith.constant 0 : index
    %311 = vector.load %arg10[%c0_127, %c0_128] : memref<1x8xf32, #tpu.memory_space<vmem>>, vector<1x8xf32>
    %312 = vector.broadcast %311 : vector<1x8xf32> to vector<16x8xf32>
    %313 = arith.addf %310, %312 : vector<16x8xf32>
    %314 = arith.negf %313 : vector<16x8xf32>
    %315 = math.exp %314 : vector<16x8xf32>
    %cst_129 = arith.constant 1.000000e+00 : f32
    %316 = vector.broadcast %cst_129 : f32 to vector<16x8xf32>
    %317 = arith.addf %316, %315 : vector<16x8xf32>
    %318 = arith.divf %316, %317 : vector<16x8xf32>
    %319 = vector.shape_cast %318 : vector<16x8xf32> to vector<8x2x8xf32>
    %c0_130 = arith.constant 0 : index
    %c0_131 = arith.constant 0 : index
    %c0_132 = arith.constant 0 : index
    %320 = vector.load %arg11[%c0_130, %c0_131, %c0_132] : memref<8x2x8xf32, #tpu.memory_space<vmem>>, vector<8x2x8xf32>
    tpu.vector_store %arg11[%c0_130, %c0_131, %c0_132], %319 {strides = array<i32>} : memref<8x2x8xf32, #tpu.memory_space<vmem>>, vector<8x2x8xf32>,
    return
  }
  func.func @transform_0(%arg0: i32) -> (i32, i32, i32) {
    %c0_i32 = arith.constant 0 : i32
    %c0_i32_0 = arith.constant 0 : i32
    %c0_i32_1 = arith.constant 0 : i32
    return %c0_i32, %arg0, %c0_i32_0 : i32, i32, i32
  }
  func.func @transform_1(%arg0: i32) -> (i32, i32, i32) {
    %c0_i32 = arith.constant 0 : i32
    %c0_i32_0 = arith.constant 0 : i32
    %c0_i32_1 = arith.constant 0 : i32
    return %c0_i32, %arg0, %c0_i32_0 : i32, i32, i32
  }
  func.func @transform_2(%arg0: i32) -> (i32, i32) {
    %c0_i32 = arith.constant 0 : i32
    %c0_i32_0 = arith.constant 0 : i32
    return %arg0, %c0_i32 : i32, i32
  }
  func.func @transform_3(%arg0: i32) -> (i32, i32) {
    %c0_i32 = arith.constant 0 : i32
    %c0_i32_0 = arith.constant 0 : i32
    return %arg0, %c0_i32 : i32, i32
  }
  func.func @transform_4(%arg0: i32) -> (i32, i32) {
    %c0_i32 = arith.constant 0 : i32
    %c0_i32_0 = arith.constant 0 : i32
    %c0_i32_1 = arith.constant 0 : i32
    return %c0_i32, %c0_i32_0 : i32, i32
  }
  func.func @transform_5(%arg0: i32) -> (i32, i32) {
    %c0_i32 = arith.constant 0 : i32
    %c0_i32_0 = arith.constant 0 : i32
    %c0_i32_1 = arith.constant 0 : i32
    return %c0_i32, %c0_i32_0 : i32, i32
  }
  func.func @transform_6(%arg0: i32) -> (i32, i32) {
    %c0_i32 = arith.constant 0 : i32
    %c0_i32_0 = arith.constant 0 : i32
    %c0_i32_1 = arith.constant 0 : i32
    return %c0_i32, %c0_i32_0 : i32, i32
  }
  func.func @transform_7(%arg0: i32) -> (i32, i32) {
    %c0_i32 = arith.constant 0 : i32
    %c0_i32_0 = arith.constant 0 : i32
    %c0_i32_1 = arith.constant 0 : i32
    return %c0_i32, %c0_i32_0 : i32, i32
  }
  func.func @transform_8(%arg0: i32) -> (i32, i32) {
    %c0_i32 = arith.constant 0 : i32
    %c0_i32_0 = arith.constant 0 : i32
    %c0_i32_1 = arith.constant 0 : i32
    return %c0_i32, %c0_i32_0 : i32, i32
  }
  func.func @transform_9(%arg0: i32) -> (i32, i32) {
    %c0_i32 = arith.constant 0 : i32
    %c0_i32_0 = arith.constant 0 : i32
    %c0_i32_1 = arith.constant 0 : i32
    return %c0_i32, %c0_i32_0 : i32, i32
  }
  func.func @transform_10(%arg0: i32) -> (i32, i32, i32) {
    %c0_i32 = arith.constant 0 : i32
    %c0_i32_0 = arith.constant 0 : i32
    %c0_i32_1 = arith.constant 0 : i32
    return %c0_i32, %arg0, %c0_i32_0 : i32, i32, i32
  }
  func.func @transform_11(%arg0: i32) -> (i32, i32, i32) {
    %c0_i32 = arith.constant 0 : i32
    %c0_i32_0 = arith.constant 0 : i32
    %c0_i32_1 = arith.constant 0 : i32
    return %c0_i32, %arg0, %c0_i32_0 : i32, i32, i32
  }
  func.func @transform_12(%arg0: i32) -> (i32, i32, i32) {
    %c0_i32 = arith.constant 0 : i32
    %c0_i32_0 = arith.constant 0 : i32
    %c0_i32_1 = arith.constant 0 : i32
    return %c0_i32, %arg0, %c0_i32_0 : i32, i32, i32
  }
}

</mosaic_0001>

<llo_original>
// kernel: tpu_custom_call.1
$region0: #{tpu_custom_call.1}
  #allocation0 [shape = 'u32[]', space=smem, size = 0x4, offset = 0x4, fixed_abs, tag = 'smem constant byte address 0x4 - core index']
  #allocation1 [shape = 'u32[72,128]{1,0:T(1,128)}', space=vmem, size = 0x9000, scoped, tag = 'internal scratch']
  #allocation2 [shape = 'f32[8,2,512]{2,1,0:T(2,128)}', space=vmem, size = 0x8000, scoped, tag = 'scratch operand']
  #allocation3 [shape = 'f32[8,2,128]{2,1,0:T(2,128)}', space=vmem, size = 0x2000, scoped, tag = 'scratch operand']
  %s0 = inlined_call_operand.hbm [shape: f32[10,2,16], index: 0, kind: input, shape index: {}]
  %s1 = inlined_call_operand.vmem [shape: f32[8,2,1], index: 1, kind: input, shape index: {}]
  %s2 = inlined_call_operand.hbm [shape: f32[2,128], index: 2, kind: input, shape index: {}]
  %s3 = inlined_call_operand.hbm [shape: f32[2,128], index: 3, kind: input, shape index: {}]
  %s4 = inlined_call_operand.vmem [shape: f32[16,32], index: 4, kind: input, shape index: {}]
  %s5 = inlined_call_operand.vmem [shape: f32[32,512], index: 5, kind: input, shape index: {}]
  %s6 = inlined_call_operand.hbm [shape: f32[128,512], index: 6, kind: input, shape index: {}]
  %s7 = inlined_call_operand.vmem [shape: f32[1,512], index: 7, kind: input, shape index: {}]
  %s8 = inlined_call_operand.vmem [shape: f32[128,8], index: 8, kind: input, shape index: {}]
  %s9 = inlined_call_operand.vmem [shape: f32[1,8], index: 9, kind: input, shape index: {}]
  %s10 = inlined_call_operand.hbm [shape: f32[8,2,8], index: 10, kind: output, shape index: {0}]
  %s11 = inlined_call_operand.hbm [shape: f32[8,2,32], index: 11, kind: output, shape index: {1}]
  %s12 = inlined_call_operand.hbm [shape: f32[10,2,32], index: 12, kind: output, shape index: {2}]
  %13 = xla_tuple %s10, %s11, %s12
  %s14 = sld [smem:[#allocation0]]
  $region82: #{tpu_custom_call.1} parent=0
    _
  %s16 = ssub.s32 1, %s14
  %s17 = scalar_select 0, %s16, %s14
  $region1: #{tpu_custom_call.1} parent=0
    #allocation4 [shape = 'u8[10240]{0}', space=vmem, size = 0x2800, scoped, tag = 'input window, operand 0, single buffered']
    #allocation5 [shape = 's32[1]{0}', space=sflag, size = 0x4, scoped, tag = 'scoped memory for tpu_custom_call.1']
    #allocation6 [shape = 's32[1]{0}', space=sflag, size = 0x4, scoped, tag = 'scoped memory for tpu_custom_call.1']
    #allocation7 [shape = 'u8[1024]{0}', space=vmem, size = 0x400, scoped, tag = 'input window, operand 2, single buffered']
    #allocation8 [shape = 's32[1]{0}', space=sflag, size = 0x4, scoped, tag = 'scoped memory for tpu_custom_call.1']
    #allocation9 [shape = 'u8[1024]{0}', space=vmem, size = 0x400, scoped, tag = 'input window, operand 3, single buffered']
    #allocation10 [shape = 'u8[262144]{0}', space=vmem, size = 0x40000, scoped, tag = 'input window, operand 6, single buffered']
    #allocation11 [shape = 's32[1]{0}', space=sflag, size = 0x4, scoped, tag = 'scoped memory for tpu_custom_call.1']
    #allocation12 [shape = 'u8[8192]{0}', space=vmem, size = 0x2000, scoped, tag = 'output window, operand 0, single buffered']
    #allocation13 [shape = 'u8[8192]{0}', space=vmem, size = 0x2000, scoped, tag = 'output window, operand 1, single buffered']
    #allocation14 [shape = 's32[1]{0}', space=sflag, size = 0x4, scoped, tag = 'scoped memory for tpu_custom_call.1']
    #allocation15 [shape = 'u8[10240]{0}', space=vmem, size = 0x2800, scoped, tag = 'output window, operand 2, single buffered']
    %18 = vsyncpa [#allocation5], 0
    %19 = vsyncpa [#allocation8], 0
    %20 = vsyncpa [#allocation11], 0
    %21 = vsyncpa [#allocation6], 0
    %22 = vsyncpa [#allocation14], 0
    // Predicated region
    $region2: #{tpu_custom_call.1} parent=1 // pred_check
      _
    $region3: #{tpu_custom_call.1} parent=1 // pred_check_branch
      %24 = sbr.rel (0) target = $region5
    $region4: #{tpu_custom_call.1} parent=1 // pred_region
      %26 = vsyncadd [#allocation5], 0
      %s27 = sshll.u32 %s0, 4
      %s28 = int_to_ptr.hbm [resolvable:$true] %s27
      %s29 = sshll.u32 [#allocation4], 4
      %s30 = int_to_ptr.vmem [resolvable:$true] %s29
      %35 = dma.hbm_to_vmem [thread:$0]  %s28, 320, %s30, [#allocation5], 32, 32, 2
    $region5: #{tpu_custom_call.1} parent=1 // pred_fallthru
      _
    // Predicated region
    $region6: #{tpu_custom_call.1} parent=1 // pred_check
      _
    $region7: #{tpu_custom_call.1} parent=1 // pred_check_branch
      %37 = sbr.rel (0) target = $region9
    $region8: #{tpu_custom_call.1} parent=1 // pred_region
      _
    $region9: #{tpu_custom_call.1} parent=1 // pred_fallthru
      _
    // Predicated region
    $region10: #{tpu_custom_call.1} parent=1 // pred_check
      _
    $region11: #{tpu_custom_call.1} parent=1 // pred_check_branch
      %39 = sbr.rel (0) target = $region13
    $region12: #{tpu_custom_call.1} parent=1 // pred_region
      %41 = vsyncadd [#allocation8], 0
      %s43 = sshll.u32 %s2, 4
      %s44 = int_to_ptr.hbm [resolvable:$true] %s43
      %s45 = sshll.u32 [#allocation7], 4
      %s46 = int_to_ptr.vmem [resolvable:$true] %s45
      %48 = dma.hbm_to_vmem [thread:$0]  %s44, 32, %s46, [#allocation8]
    $region13: #{tpu_custom_call.1} parent=1 // pred_fallthru
      _
    // Predicated region
    $region14: #{tpu_custom_call.1} parent=1 // pred_check
      _
    $region15: #{tpu_custom_call.1} parent=1 // pred_check_branch
      %50 = sbr.rel (0) target = $region17
    $region16: #{tpu_custom_call.1} parent=1 // pred_region
      %52 = vsyncadd [#allocation8], 0
      %s54 = sshll.u32 %s3, 4
      %s55 = int_to_ptr.hbm [resolvable:$true] %s54
      %s56 = sshll.u32 [#allocation9], 4
      %s57 = int_to_ptr.vmem [resolvable:$true] %s56
      %59 = dma.hbm_to_vmem [thread:$0]  %s55, 32, %s57, [#allocation8]
    $region17: #{tpu_custom_call.1} parent=1 // pred_fallthru
      _
    // Predicated region
    $region18: #{tpu_custom_call.1} parent=1 // pred_check
      _
    $region19: #{tpu_custom_call.1} parent=1 // pred_check_branch
      %61 = sbr.rel (0) target = $region21
    $region20: #{tpu_custom_call.1} parent=1 // pred_region
      _
    $region21: #{tpu_custom_call.1} parent=1 // pred_fallthru
      _
    // Predicated region
    $region22: #{tpu_custom_call.1} parent=1 // pred_check
      _
    $region23: #{tpu_custom_call.1} parent=1 // pred_check_branch
      %63 = sbr.rel (0) target = $region25
    $region24: #{tpu_custom_call.1} parent=1 // pred_region
      _
    $region25: #{tpu_custom_call.1} parent=1 // pred_fallthru
      _
    // Predicated region
    $region26: #{tpu_custom_call.1} parent=1 // pred_check
      _
    $region27: #{tpu_custom_call.1} parent=1 // pred_check_branch
      %65 = sbr.rel (0) target = $region29
    $region28: #{tpu_custom_call.1} parent=1 // pred_region
      %67 = vsyncadd [#allocation11], 0
      %s68 = sshll.u32 %s6, 4
      %s69 = int_to_ptr.hbm [resolvable:$true] %s68
      %s70 = sshll.u32 [#allocation10], 4
      %s71 = int_to_ptr.vmem [resolvable:$true] %s70
      %76 = dma.hbm_to_vmem [thread:$0]  %s69, 8192, %s71, [#allocation11], 512, 512, 32
    $region29: #{tpu_custom_call.1} parent=1 // pred_fallthru
      _
    // Predicated region
    $region30: #{tpu_custom_call.1} parent=1 // pred_check
      _
    $region31: #{tpu_custom_call.1} parent=1 // pred_check_branch
      %78 = sbr.rel (0) target = $region33
    $region32: #{tpu_custom_call.1} parent=1 // pred_region
      _
    $region33: #{tpu_custom_call.1} parent=1 // pred_fallthru
      _
    // Predicated region
    $region34: #{tpu_custom_call.1} parent=1 // pred_check
      _
    $region35: #{tpu_custom_call.1} parent=1 // pred_check_branch
      %80 = sbr.rel (0) target = $region37
    $region36: #{tpu_custom_call.1} parent=1 // pred_region
      _
    $region37: #{tpu_custom_call.1} parent=1 // pred_fallthru
      _
    // Predicated region
    $region38: #{tpu_custom_call.1} parent=1 // pred_check
      _
    $region39: #{tpu_custom_call.1} parent=1 // pred_check_branch
      %82 = sbr.rel (0) target = $region41
    $region40: #{tpu_custom_call.1} parent=1 // pred_region
      _
    $region41: #{tpu_custom_call.1} parent=1 // pred_fallthru
      _
    // Predicated region
    $region42: #{tpu_custom_call.1} parent=1 // pred_check
      _
    $region43: #{tpu_custom_call.1} parent=1 // pred_check_branch
      %84 = sbr.rel (0) target = $region45
    $region44: #{tpu_custom_call.1} parent=1 // pred_region
      %86 = dma.done [#allocation5], 320
    $region45: #{tpu_custom_call.1} parent=1 // pred_fallthru
      _
    // Predicated region
    $region46: #{tpu_custom_call.1} parent=1 // pred_check
      _
    $region47: #{tpu_custom_call.1} parent=1 // pred_check_branch
      %88 = sbr.rel (0) target = $region49
    $region48: #{tpu_custom_call.1} parent=1 // pred_region
      %90 = dma.done [#allocation8], 32
    $region49: #{tpu_custom_call.1} parent=1 // pred_fallthru
      _
    // Predicated region
    $region50: #{tpu_custom_call.1} parent=1 // pred_check
      _
    $region51: #{tpu_custom_call.1} parent=1 // pred_check_branch
      %92 = sbr.rel (0) target = $region53
    $region52: #{tpu_custom_call.1} parent=1 // pred_region
      %94 = dma.done [#allocation8], 32
    $region53: #{tpu_custom_call.1} parent=1 // pred_fallthru
      _
    // Predicated region
    $region54: #{tpu_custom_call.1} parent=1 // pred_check
      _
    $region55: #{tpu_custom_call.1} parent=1 // pred_check_branch
      %96 = sbr.rel (0) target = $region57
    $region56: #{tpu_custom_call.1} parent=1 // pred_region
      %98 = dma.done [#allocation11], 8192
    $region57: #{tpu_custom_call.1} parent=1 // pred_fallthru
      _
    %v99 = vld [vmem:[#allocation4] sm:$0x3]
    %v100 = vld [vmem:[#allocation4 + $0x2] sm:$0x3]
    %v101 = vld [vmem:[#allocation4 + $0x4] sm:$0x3]
    %v102 = vld [vmem:[#allocation4 + $0x6] sm:$0x3]
    %v103 = vld [vmem:[#allocation4 + $0x8] sm:$0x3]
    %v104 = vld [vmem:[#allocation4 + $0xa] sm:$0x3]
    %v105 = vld [vmem:[#allocation4 + $0xc] sm:$0x3]
    %v106 = vld [vmem:[#allocation4 + $0xe] sm:$0x3]
    %v107 = vld [vmem:[#allocation4 + $0x10] sm:$0x3]
    %v108 = vld [vmem:[#allocation4 + $0x12] sm:$0x3]
    %v109 = vld [vmem:[%s4] sm:$0xff]
    %v110 = vld [vmem:[%s4 + $0x8] sm:$0xff]
    %121 = vst [vmem:[#allocation1] ss:$4 sm:$0xff] %v99
    %s122 = scalar_lea.vmem [#allocation1], 1
    %123 = vst [vmem:[%s122] ss:$4 sm:$0xff] %v100
    %s124 = scalar_lea.vmem [#allocation1], 2
    %125 = vst [vmem:[%s124] ss:$4 sm:$0xff] %v101
    %s126 = scalar_lea.vmem [#allocation1], 3
    %127 = vst [vmem:[%s126] ss:$4 sm:$0xff] %v102
    %s128 = scalar_lea.vmem [#allocation1], 32
    %129 = vst [vmem:[%s128] ss:$4 sm:$0xff] %v103
    %s130 = scalar_lea.vmem [#allocation1], 33
    %131 = vst [vmem:[%s130] ss:$4 sm:$0xff] %v104
    %s132 = scalar_lea.vmem [#allocation1], 34
    %133 = vst [vmem:[%s132] ss:$4 sm:$0xff] %v105
    %s134 = scalar_lea.vmem [#allocation1], 35
    %135 = vst [vmem:[%s134] ss:$4 sm:$0xff] %v106
    %v136 = vld.sshfl [vmem:[#allocation1] sm:$0xff pattern:$0x73625140]
    %v137 = vld.sshfl [vmem:[#allocation1 + $0x20] sm:$0xff pattern:$0x73625140]
    %138 = vst [vmem:[#allocation1] ss:$4 sm:$0xff] %v107
    %139 = vst [vmem:[%s122] ss:$4 sm:$0xff] %v108
    %v140 = vld.sshfl [vmem:[#allocation1] sm:$0xff pattern:$0x73625140]
    %vm141 = vcmask 130048
    %v142 = vsel %vm141, %v136, 0
    %v144 = vsel %vm141, %v137, 0
    %v146 = vsel %vm141, %v140, 0
    %148 = vmatpush.msra.mxu0 0.0
    %149 = vmatpush.msra.mxu0 0.0
    %150 = vmatpush.msra.mxu0 0.0
    %151 = vmatpush.msra.mxu0 0.0
    %152 = vmatpush.msra.mxu0 0.0
    %153 = vmatpush.msra.mxu0 0.0
    %154 = vmatpush.msra.mxu0 0.0
    %155 = vmatpush.msra.mxu0 0.0
    %156 = vmatpush.msra.mxu0 0.0
    %157 = vmatpush.msra.mxu0 0.0
    %158 = vmatpush.msra.mxu0 0.0
    %159 = vmatpush.msra.mxu0 0.0
    %160 = vmatpush.msra.mxu0 0.0
    %161 = vmatpush.msra.mxu0 0.0
    %162 = vmatpush.msra.mxu0 %v110
    %163 = vmatpush.msra.mxu0 %v109
    %164 = vmatmul.f32.gmra.mxu0 %v142
    %v165 = vpop.f32.mrf.mxu0
    %v166 = vadd.f32 0.0, %v165
    %167 = vmatmul.f32.gmra.mxu0 %v144
    %v168 = vpop.f32.mrf.mxu0
    %v169 = vadd.f32 0.0, %v168
    %170 = vmatmul.f32.gmra.mxu0 %v146
    %v171 = vpop.f32.mrf.mxu0
    %v172 = vadd.f32 0.0, %v171
    %173 = vdwg.mxu0
    %v177 = vrot.slane %v166, 2
    %v178 = vrot.slane %v166, 4
    %v179 = vrot.slane %v166, 6
    %v180 = vrot.slane %v169, 2
    %v181 = vrot.slane %v169, 4
    %v182 = vrot.slane %v169, 6
    %v183 = vrot.slane %v172, 2
    %vm191 = vcmask 254976
    %192 = vst.msk [vmem:[#allocation15] sm:$0x3] %vm191, %v166
    %193 = vst.msk [vmem:[#allocation15 + $0x2] sm:$0x3] %vm191, %v177
    %194 = vst.msk [vmem:[#allocation15 + $0x4] sm:$0x3] %vm191, %v178
    %195 = vst.msk [vmem:[#allocation15 + $0x6] sm:$0x3] %vm191, %v179
    %196 = vst.msk [vmem:[#allocation15 + $0x8] sm:$0x3] %vm191, %v169
    %197 = vst.msk [vmem:[#allocation15 + $0xa] sm:$0x3] %vm191, %v180
    %198 = vst.msk [vmem:[#allocation15 + $0xc] sm:$0x3] %vm191, %v181
    %199 = vst.msk [vmem:[#allocation15 + $0xe] sm:$0x3] %vm191, %v182
    %200 = vst.msk [vmem:[#allocation15 + $0x10] sm:$0x3] %vm191, %v172
    %201 = vst.msk [vmem:[#allocation15 + $0x12] sm:$0x3] %vm191, %v183
    %v202 = vld [vmem:[%s5] sm:$0xff]
    %v203 = vld [vmem:[%s5 + $0x8] sm:$0xff]
    %v204 = vld [vmem:[%s5 + $0x10] sm:$0xff]
    %v205 = vld [vmem:[%s5 + $0x18] sm:$0xff]
    %v206 = vld [vmem:[%s5 + $0x20] sm:$0xff]
    %v207 = vld [vmem:[%s5 + $0x28] sm:$0xff]
    %v208 = vld [vmem:[%s5 + $0x30] sm:$0xff]
    %v209 = vld [vmem:[%s5 + $0x38] sm:$0xff]
    %v210 = vld [vmem:[%s5 + $0x40] sm:$0xff]
    %v211 = vld [vmem:[%s5 + $0x48] sm:$0xff]
    %v212 = vld [vmem:[%s5 + $0x50] sm:$0xff]
    %v213 = vld [vmem:[%s5 + $0x58] sm:$0xff]
    %v214 = vld [vmem:[%s5 + $0x60] sm:$0xff]
    %v215 = vld [vmem:[%s5 + $0x68] sm:$0xff]
    %v216 = vld [vmem:[%s5 + $0x70] sm:$0xff]
    %v217 = vld [vmem:[%s5 + $0x78] sm:$0xff]
    %v218 = vld [vmem:[%s7] sm:$0xf]
    %v220 = vperm.slane %v218, 0
    %v221 = vperm.slane %v218, 1
    %v222 = vperm.slane %v218, 2
    %v223 = vperm.slane %v218, 3
    %vm228 = vcmask 261120
    %v229 = vsel %vm228, %v166, 0
    %v231 = vsel %vm228, %v169, 0
    %233 = vmatpush.msra.mxu0 0.0
    %234 = vmatpush.msra.mxu0 0.0
    %235 = vmatpush.msra.mxu0 0.0
    %236 = vmatpush.msra.mxu0 0.0
    %237 = vmatpush.msra.mxu0 0.0
    %238 = vmatpush.msra.mxu0 0.0
    %239 = vmatpush.msra.mxu0 0.0
    %240 = vmatpush.msra.mxu0 0.0
    %241 = vmatpush.msra.mxu0 0.0
    %242 = vmatpush.msra.mxu0 0.0
    %243 = vmatpush.msra.mxu0 0.0
    %244 = vmatpush.msra.mxu0 0.0
    %245 = vmatpush.msra.mxu0 %v214
    %246 = vmatpush.msra.mxu0 %v210
    %247 = vmatpush.msra.mxu0 %v206
    %248 = vmatpush.msra.mxu0 %v202
    %249 = vmatmul.f32.gmra.mxu0 %v229
    %v250 = vpop.f32.mrf.mxu0
    %v251 = vadd.f32 %v220, %v250
    %252 = vmatmul.f32.gmra.mxu0 %v231
    %v253 = vpop.f32.mrf.mxu0
    %v254 = vadd.f32 %v220, %v253
    %255 = vdwg.mxu0
    %256 = vmatpush.msra.mxu0 0.0
    %257 = vmatpush.msra.mxu0 0.0
    %258 = vmatpush.msra.mxu0 0.0
    %259 = vmatpush.msra.mxu0 0.0
    %260 = vmatpush.msra.mxu0 0.0
    %261 = vmatpush.msra.mxu0 0.0
    %262 = vmatpush.msra.mxu0 0.0
    %263 = vmatpush.msra.mxu0 0.0
    %264 = vmatpush.msra.mxu0 0.0
    %265 = vmatpush.msra.mxu0 0.0
    %266 = vmatpush.msra.mxu0 0.0
    %267 = vmatpush.msra.mxu0 0.0
    %268 = vmatpush.msra.mxu0 %v215
    %269 = vmatpush.msra.mxu0 %v211
    %270 = vmatpush.msra.mxu0 %v207
    %271 = vmatpush.msra.mxu0 %v203
    %272 = vmatmul.f32.gmra.mxu0 %v229
    %v273 = vpop.f32.mrf.mxu0
    %v274 = vadd.f32 %v221, %v273
    %275 = vmatmul.f32.gmra.mxu0 %v231
    %v276 = vpop.f32.mrf.mxu0
    %v277 = vadd.f32 %v221, %v276
    %278 = vdwg.mxu0
    %279 = vmatpush.msra.mxu0 0.0
    %280 = vmatpush.msra.mxu0 0.0
    %281 = vmatpush.msra.mxu0 0.0
    %282 = vmatpush.msra.mxu0 0.0
    %283 = vmatpush.msra.mxu0 0.0
    %284 = vmatpush.msra.mxu0 0.0
    %285 = vmatpush.msra.mxu0 0.0
    %286 = vmatpush.msra.mxu0 0.0
    %287 = vmatpush.msra.mxu0 0.0
    %288 = vmatpush.msra.mxu0 0.0
    %289 = vmatpush.msra.mxu0 0.0
    %290 = vmatpush.msra.mxu0 0.0
    %291 = vmatpush.msra.mxu0 %v216
    %292 = vmatpush.msra.mxu0 %v212
    %293 = vmatpush.msra.mxu0 %v208
    %294 = vmatpush.msra.mxu0 %v204
    %295 = vmatmul.f32.gmra.mxu0 %v229
    %v296 = vpop.f32.mrf.mxu0
    %v297 = vadd.f32 %v222, %v296
    %298 = vmatmul.f32.gmra.mxu0 %v231
    %v299 = vpop.f32.mrf.mxu0
    %v300 = vadd.f32 %v222, %v299
    %301 = vdwg.mxu0
    %302 = vmatpush.msra.mxu0 0.0
    %303 = vmatpush.msra.mxu0 0.0
    %304 = vmatpush.msra.mxu0 0.0
    %305 = vmatpush.msra.mxu0 0.0
    %306 = vmatpush.msra.mxu0 0.0
    %307 = vmatpush.msra.mxu0 0.0
    %308 = vmatpush.msra.mxu0 0.0
    %309 = vmatpush.msra.mxu0 0.0
    %310 = vmatpush.msra.mxu0 0.0
    %311 = vmatpush.msra.mxu0 0.0
    %312 = vmatpush.msra.mxu0 0.0
    %313 = vmatpush.msra.mxu0 0.0
    %314 = vmatpush.msra.mxu0 %v217
    %315 = vmatpush.msra.mxu0 %v213
    %316 = vmatpush.msra.mxu0 %v209
    %317 = vmatpush.msra.mxu0 %v205
    %318 = vmatmul.f32.gmra.mxu0 %v229
    %v319 = vpop.f32.mrf.mxu0
    %v320 = vadd.f32 %v223, %v319
    %321 = vmatmul.f32.gmra.mxu0 %v231
    %v322 = vpop.f32.mrf.mxu0
    %v323 = vadd.f32 %v223, %v322
    %324 = vdwg.mxu0
    %v333 = vrot.slane %v274, 6
    %v334 = vrot.slane %v297, 4
    %v335 = vrot.slane %v320, 2
    %v336 = vrot.slane %v277, 6
    %v337 = vrot.slane %v300, 4
    %v338 = vrot.slane %v323, 2
    %vm339 = vcmask 1041408
    %v340 = vsel %vm339, %v251, %v333
    %vm341 = vcmask 1045508
    %v342 = vsel %vm341, %v334, %v335
    %vm343 = vcmask 1043456
    %v344 = vsel %vm343, %v340, %v342
    %vm345 = vcmask 1043458
    %v346 = vsel %vm345, %v251, %v333
    %vm347 = vcmask 1045504
    %v348 = vsel %vm347, %v335, %v334
    %vm349 = vcmask 1045506
    %v350 = vsel %vm349, %v346, %v348
    %v351 = vrot.slane %v350, 2
    %v352 = vsel %vm341, %v251, %v333
    %v353 = vsel %vm339, %v334, %v335
    %v354 = vsel %vm343, %v353, %v352
    %v355 = vrot.slane %v354, 4
    %v356 = vsel %vm347, %v333, %v251
    %v357 = vsel %vm345, %v334, %v335
    %v358 = vsel %vm349, %v357, %v356
    %v359 = vrot.slane %v358, 6
    %v360 = vsel %vm339, %v254, %v336
    %v361 = vsel %vm341, %v337, %v338
    %v362 = vsel %vm343, %v360, %v361
    %v363 = vsel %vm345, %v254, %v336
    %v364 = vsel %vm347, %v338, %v337
    %v365 = vsel %vm349, %v363, %v364
    %v366 = vrot.slane %v365, 2
    %v367 = vsel %vm341, %v254, %v336
    %v368 = vsel %vm339, %v337, %v338
    %v369 = vsel %vm343, %v368, %v367
    %v370 = vrot.slane %v369, 4
    %v371 = vsel %vm347, %v336, %v254
    %v372 = vsel %vm345, %v337, %v338
    %v373 = vsel %vm349, %v372, %v371
    %v374 = vrot.slane %v373, 6
    %383 = vst [vmem:[#allocation2] sm:$0xff] %v344
    %384 = vst [vmem:[#allocation2 + $0x8] sm:$0xff] %v351
    %385 = vst [vmem:[#allocation2 + $0x10] sm:$0xff] %v355
    %386 = vst [vmem:[#allocation2 + $0x18] sm:$0xff] %v359
    %387 = vst [vmem:[#allocation2 + $0x20] sm:$0xff] %v362
    %388 = vst [vmem:[#allocation2 + $0x28] sm:$0xff] %v366
    %389 = vst [vmem:[#allocation2 + $0x30] sm:$0xff] %v370
    %390 = vst [vmem:[#allocation2 + $0x38] sm:$0xff] %v374
    %v391 = vld [vmem:[#allocation7] sm:$0x3]
    %v392 = vld [vmem:[#allocation9] sm:$0x3]
    %v393 = vld [vmem:[#allocation10] sm:$0xff]
    %v394 = vld [vmem:[#allocation10 + $0x8] sm:$0xff]
    %v395 = vld [vmem:[#allocation10 + $0x10] sm:$0xff]
    %v396 = vld [vmem:[#allocation10 + $0x18] sm:$0xff]
    %v397 = vld [vmem:[#allocation10 + $0x20] sm:$0xff]
    %v398 = vld [vmem:[#allocation10 + $0x28] sm:$0xff]
    %v399 = vld [vmem:[#allocation10 + $0x30] sm:$0xff]
    %v400 = vld [vmem:[#allocation10 + $0x38] sm:$0xff]
    %v401 = vld [vmem:[#allocation10 + $0x40] sm:$0xff]
    %v402 = vld [vmem:[#allocation10 + $0x48] sm:$0xff]
    %v403 = vld [vmem:[#allocation10 + $0x50] sm:$0xff]
    %v404 = vld [vmem:[#allocation10 + $0x58] sm:$0xff]
    %v405 = vld [vmem:[#allocation10 + $0x60] sm:$0xff]
    %v406 = vld [vmem:[#allocation10 + $0x68] sm:$0xff]
    %v407 = vld [vmem:[#allocation10 + $0x70] sm:$0xff]
    %v408 = vld [vmem:[#allocation10 + $0x78] sm:$0xff]
    %v409 = vld [vmem:[#allocation10 + $0x80] sm:$0xff]
    %v410 = vld [vmem:[#allocation10 + $0x88] sm:$0xff]
    %v411 = vld [vmem:[#allocation10 + $0x90] sm:$0xff]
    %v412 = vld [vmem:[#allocation10 + $0x98] sm:$0xff]
    %v413 = vld [vmem:[#allocation10 + $0xa0] sm:$0xff]
    %v414 = vld [vmem:[#allocation10 + $0xa8] sm:$0xff]
    %v415 = vld [vmem:[#allocation10 + $0xb0] sm:$0xff]
    %v416 = vld [vmem:[#allocation10 + $0xb8] sm:$0xff]
    %v417 = vld [vmem:[#allocation10 + $0xc0] sm:$0xff]
    %v418 = vld [vmem:[#allocation10 + $0xc8] sm:$0xff]
    %v419 = vld [vmem:[#allocation10 + $0xd0] sm:$0xff]
    %v420 = vld [vmem:[#allocation10 + $0xd8] sm:$0xff]
    %v421 = vld [vmem:[#allocation10 + $0xe0] sm:$0xff]
    %v422 = vld [vmem:[#allocation10 + $0xe8] sm:$0xff]
    %v423 = vld [vmem:[#allocation10 + $0xf0] sm:$0xff]
    %v424 = vld [vmem:[#allocation10 + $0xf8] sm:$0xff]
    %v425 = vld [vmem:[#allocation10 + $0x100] sm:$0xff]
    %v426 = vld [vmem:[#allocation10 + $0x108] sm:$0xff]
    %v427 = vld [vmem:[#allocation10 + $0x110] sm:$0xff]
    %v428 = vld [vmem:[#allocation10 + $0x118] sm:$0xff]
    %v429 = vld [vmem:[#allocation10 + $0x120] sm:$0xff]
    %v430 = vld [vmem:[#allocation10 + $0x128] sm:$0xff]
    %v431 = vld [vmem:[#allocation10 + $0x130] sm:$0xff]
    %v432 = vld [vmem:[#allocation10 + $0x138] sm:$0xff]
    %v433 = vld [vmem:[#allocation10 + $0x140] sm:$0xff]
    %v434 = vld [vmem:[#allocation10 + $0x148] sm:$0xff]
    %v435 = vld [vmem:[#allocation10 + $0x150] sm:$0xff]
    %v436 = vld [vmem:[#allocation10 + $0x158] sm:$0xff]
    %v437 = vld [vmem:[#allocation10 + $0x160] sm:$0xff]
    %v438 = vld [vmem:[#allocation10 + $0x168] sm:$0xff]
    %v439 = vld [vmem:[#allocation10 + $0x170] sm:$0xff]
    %v440 = vld [vmem:[#allocation10 + $0x178] sm:$0xff]
    %v441 = vld [vmem:[#allocation10 + $0x180] sm:$0xff]
    %v442 = vld [vmem:[#allocation10 + $0x188] sm:$0xff]
    %v443 = vld [vmem:[#allocation10 + $0x190] sm:$0xff]
    %v444 = vld [vmem:[#allocation10 + $0x198] sm:$0xff]
    %v445 = vld [vmem:[#allocation10 + $0x1a0] sm:$0xff]
    %v446 = vld [vmem:[#allocation10 + $0x1a8] sm:$0xff]
    %v447 = vld [vmem:[#allocation10 + $0x1b0] sm:$0xff]
    %v448 = vld [vmem:[#allocation10 + $0x1b8] sm:$0xff]
    %v449 = vld [vmem:[#allocation10 + $0x1c0] sm:$0xff]
    %v450 = vld [vmem:[#allocation10 + $0x1c8] sm:$0xff]
    %v451 = vld [vmem:[#allocation10 + $0x1d0] sm:$0xff]
    %v452 = vld [vmem:[#allocation10 + $0x1d8] sm:$0xff]
    %v453 = vld [vmem:[#allocation10 + $0x1e0] sm:$0xff]
    %v454 = vld [vmem:[#allocation10 + $0x1e8] sm:$0xff]
    %v455 = vld [vmem:[#allocation10 + $0x1f0] sm:$0xff]
    %v456 = vld [vmem:[#allocation10 + $0x1f8] sm:$0xff]
    %v457 = vld [vmem:[#allocation2] sm:$0xff]
    %458 = vmatpush.msra.mxu0 %v453
    %459 = vmatpush.msra.mxu0 %v449
    %460 = vmatpush.msra.mxu0 %v445
    %461 = vmatpush.msra.mxu0 %v441
    %462 = vmatpush.msra.mxu0 %v437
    %463 = vmatpush.msra.mxu0 %v433
    %464 = vmatpush.msra.mxu0 %v429
    %465 = vmatpush.msra.mxu0 %v425
    %466 = vmatpush.msra.mxu0 %v421
    %467 = vmatpush.msra.mxu0 %v417
    %468 = vmatpush.msra.mxu0 %v413
    %469 = vmatpush.msra.mxu0 %v409
    %470 = vmatpush.msra.mxu0 %v405
    %471 = vmatpush.msra.mxu0 %v401
    %472 = vmatpush.msra.mxu0 %v397
    %473 = vmatpush.msra.mxu0 %v393
    %474 = vmatmul.f32.gmra.mxu0 %v391
    %v475 = vpop.f32.mrf.mxu0
    %v476 = vadd.f32 0.0, %v475
    %477 = vdwg.mxu0
    %478 = vmatpush.msra.mxu0 %v454
    %479 = vmatpush.msra.mxu0 %v450
    %480 = vmatpush.msra.mxu0 %v446
    %481 = vmatpush.msra.mxu0 %v442
    %482 = vmatpush.msra.mxu0 %v438
    %483 = vmatpush.msra.mxu0 %v434
    %484 = vmatpush.msra.mxu0 %v430
    %485 = vmatpush.msra.mxu0 %v426
    %486 = vmatpush.msra.mxu0 %v422
    %487 = vmatpush.msra.mxu0 %v418
    %488 = vmatpush.msra.mxu0 %v414
    %489 = vmatpush.msra.mxu0 %v410
    %490 = vmatpush.msra.mxu0 %v406
    %491 = vmatpush.msra.mxu0 %v402
    %492 = vmatpush.msra.mxu0 %v398
    %493 = vmatpush.msra.mxu0 %v394
    %494 = vmatmul.f32.gmra.mxu0 %v391
    %v495 = vpop.f32.mrf.mxu0
    %v496 = vadd.f32 0.0, %v495
    %497 = vdwg.mxu0
    %498 = vmatpush.msra.mxu0 %v455
    %499 = vmatpush.msra.mxu0 %v451
    %500 = vmatpush.msra.mxu0 %v447
    %501 = vmatpush.msra.mxu0 %v443
    %502 = vmatpush.msra.mxu0 %v439
    %503 = vmatpush.msra.mxu0 %v435
    %504 = vmatpush.msra.mxu0 %v431
    %505 = vmatpush.msra.mxu0 %v427
    %506 = vmatpush.msra.mxu0 %v423
    %507 = vmatpush.msra.mxu0 %v419
    %508 = vmatpush.msra.mxu0 %v415
    %509 = vmatpush.msra.mxu0 %v411
    %510 = vmatpush.msra.mxu0 %v407
    %511 = vmatpush.msra.mxu0 %v403
    %512 = vmatpush.msra.mxu0 %v399
    %513 = vmatpush.msra.mxu0 %v395
    %514 = vmatmul.f32.gmra.mxu0 %v391
    %v515 = vpop.f32.mrf.mxu0
    %v516 = vadd.f32 0.0, %v515
    %517 = vdwg.mxu0
    %518 = vmatpush.msra.mxu0 %v456
    %519 = vmatpush.msra.mxu0 %v452
    %520 = vmatpush.msra.mxu0 %v448
    %521 = vmatpush.msra.mxu0 %v444
    %522 = vmatpush.msra.mxu0 %v440
    %523 = vmatpush.msra.mxu0 %v436
    %524 = vmatpush.msra.mxu0 %v432
    %525 = vmatpush.msra.mxu0 %v428
    %526 = vmatpush.msra.mxu0 %v424
    %527 = vmatpush.msra.mxu0 %v420
    %528 = vmatpush.msra.mxu0 %v416
    %529 = vmatpush.msra.mxu0 %v412
    %530 = vmatpush.msra.mxu0 %v408
    %531 = vmatpush.msra.mxu0 %v404
    %532 = vmatpush.msra.mxu0 %v400
    %533 = vmatpush.msra.mxu0 %v396
    %534 = vmatmul.f32.gmra.mxu0 %v391
    %v535 = vpop.f32.mrf.mxu0
    %v536 = vadd.f32 0.0, %v535
    %537 = vdwg.mxu0
    %v542 = vrot.slane %v496, 6
    %v543 = vrot.slane %v516, 4
    %v544 = vrot.slane %v536, 2
    %v545 = vsel %vm339, %v476, %v542
    %v546 = vsel %vm341, %v543, %v544
    %v547 = vsel %vm343, %v545, %v546
    %v549 = vadd.f32 %v457, %v547
    %v550 = vxor.u32 %v549, 2147483648
    %v551 = vmul.f32 %v550, 1.442695
    %v552 = vpow.pop %v551
    %v553 = vadd.f32 %v552, 1.0
    %v554 = vrcp.pop %v553
    %v555 = vmul.f32 %v553, %v554
    %v556 = vsub.f32 1.0, %v555
    %v557 = vmul.f32 %v554, %v556
    %v558 = vadd.f32 %v554, %v557
    %vm559 = vweird.f32 %v553
    %vm560 = vweird.f32 %v554
    %vm561 = vmor %vm559, %vm560
    %v562 = vsel %vm561, %v554, %v558
    %v563 = vand.u32 2147483647, %v553
    %vm564 = vcmp.eq.f32.partialorder %v563, 8.507059e+37
    %v565 = vand.u32 %v553, 2147483648
    %v566 = vor.u32 1.1754944e-38, %v565
    %v567 = vsel %vm564, %v566, %v562
    %v568 = vmul.f32 1.0, %v567
    %v570 = vrot.slane %v549, 2
    %v572 = vxor.u32 %v570, 2147483648
    %v573 = vmul.f32 %v572, 1.442695
    %v574 = vpow.pop %v573
    %v575 = vadd.f32 %v574, 1.0
    %v576 = vrcp.pop %v575
    %v577 = vmul.f32 %v575, %v576
    %v578 = vsub.f32 1.0, %v577
    %v579 = vmul.f32 %v576, %v578
    %v580 = vadd.f32 %v576, %v579
    %vm581 = vweird.f32 %v575
    %vm582 = vweird.f32 %v576
    %vm583 = vmor %vm581, %vm582
    %v584 = vsel %vm583, %v576, %v580
    %v585 = vand.u32 2147483647, %v575
    %vm586 = vcmp.eq.f32.partialorder %v585, 8.507059e+37
    %v587 = vand.u32 %v575, 2147483648
    %v588 = vor.u32 1.1754944e-38, %v587
    %v589 = vsel %vm586, %v588, %v584
    %v590 = vmul.f32 1.0, %v589
    %v591 = vrot.slane %v549, 4
    %v593 = vtanh.pop %v591
    %v594 = vrot.slane %v549, 6
    %v596 = vxor.u32 %v594, 2147483648
    %v597 = vmul.f32 %v596, 1.442695
    %v598 = vpow.pop %v597
    %v599 = vadd.f32 %v598, 1.0
    %v600 = vrcp.pop %v599
    %v601 = vmul.f32 %v599, %v600
    %v602 = vsub.f32 1.0, %v601
    %v603 = vmul.f32 %v600, %v602
    %v604 = vadd.f32 %v600, %v603
    %vm605 = vweird.f32 %v599
    %vm606 = vweird.f32 %v600
    %vm607 = vmor %vm605, %vm606
    %v608 = vsel %vm607, %v600, %v604
    %v609 = vand.u32 2147483647, %v599
    %vm610 = vcmp.eq.f32.partialorder %v609, 8.507059e+37
    %v611 = vand.u32 %v599, 2147483648
    %v612 = vor.u32 1.1754944e-38, %v611
    %v613 = vsel %vm610, %v612, %v608
    %v614 = vmul.f32 1.0, %v613
    %v615 = vmul.f32 %v590, %v392
    %v616 = vmul.f32 %v568, %v593
    %v617 = vadd.f32 %v615, %v616
    %v618 = vtanh.pop %v617
    %v619 = vmul.f32 %v614, %v618
    %v620 = vld [vmem:[%s1] sm:$0x3]
    %622 = vset.pattern.permute.xlu0 0
    %623 = vperm.xlu0 %622, %v620
    %v624 = vpop.permute.xlu0 %623
    %v626 = vmul.f32 %v619, %v624
    %627 = vst [vmem:[#allocation3] sm:$0x3] %v626
    %s628 = scalar_lea.vmem [#allocation2], 8
    %v629 = vld [vmem:[%s628] sm:$0xff]
    %630 = vmatpush.msra.mxu0 %v453
    %631 = vmatpush.msra.mxu0 %v449
    %632 = vmatpush.msra.mxu0 %v445
    %633 = vmatpush.msra.mxu0 %v441
    %634 = vmatpush.msra.mxu0 %v437
    %635 = vmatpush.msra.mxu0 %v433
    %636 = vmatpush.msra.mxu0 %v429
    %637 = vmatpush.msra.mxu0 %v425
    %638 = vmatpush.msra.mxu0 %v421
    %639 = vmatpush.msra.mxu0 %v417
    %640 = vmatpush.msra.mxu0 %v413
    %641 = vmatpush.msra.mxu0 %v409
    %642 = vmatpush.msra.mxu0 %v405
    %643 = vmatpush.msra.mxu0 %v401
    %644 = vmatpush.msra.mxu0 %v397
    %645 = vmatpush.msra.mxu0 %v393
    %646 = vmatmul.f32.gmra.mxu0 %v619
    %v647 = vpop.f32.mrf.mxu0
    %v648 = vadd.f32 0.0, %v647
    %649 = vdwg.mxu0
    %650 = vmatpush.msra.mxu0 %v454
    %651 = vmatpush.msra.mxu0 %v450
    %652 = vmatpush.msra.mxu0 %v446
    %653 = vmatpush.msra.mxu0 %v442
    %654 = vmatpush.msra.mxu0 %v438
    %655 = vmatpush.msra.mxu0 %v434
    %656 = vmatpush.msra.mxu0 %v430
    %657 = vmatpush.msra.mxu0 %v426
    %658 = vmatpush.msra.mxu0 %v422
    %659 = vmatpush.msra.mxu0 %v418
    %660 = vmatpush.msra.mxu0 %v414
    %661 = vmatpush.msra.mxu0 %v410
    %662 = vmatpush.msra.mxu0 %v406
    %663 = vmatpush.msra.mxu0 %v402
    %664 = vmatpush.msra.mxu0 %v398
    %665 = vmatpush.msra.mxu0 %v394
    %666 = vmatmul.f32.gmra.mxu0 %v619
    %v667 = vpop.f32.mrf.mxu0
    %v668 = vadd.f32 0.0, %v667
    %669 = vdwg.mxu0
    %670 = vmatpush.msra.mxu0 %v455
    %671 = vmatpush.msra.mxu0 %v451
    %672 = vmatpush.msra.mxu0 %v447
    %673 = vmatpush.msra.mxu0 %v443
    %674 = vmatpush.msra.mxu0 %v439
    %675 = vmatpush.msra.mxu0 %v435
    %676 = vmatpush.msra.mxu0 %v431
    %677 = vmatpush.msra.mxu0 %v427
    %678 = vmatpush.msra.mxu0 %v423
    %679 = vmatpush.msra.mxu0 %v419
    %680 = vmatpush.msra.mxu0 %v415
    %681 = vmatpush.msra.mxu0 %v411
    %682 = vmatpush.msra.mxu0 %v407
    %683 = vmatpush.msra.mxu0 %v403
    %684 = vmatpush.msra.mxu0 %v399
    %685 = vmatpush.msra.mxu0 %v395
    %686 = vmatmul.f32.gmra.mxu0 %v619
    %v687 = vpop.f32.mrf.mxu0
    %v688 = vadd.f32 0.0, %v687
    %689 = vdwg.mxu0
    %690 = vmatpush.msra.mxu0 %v456
    %691 = vmatpush.msra.mxu0 %v452
    %692 = vmatpush.msra.mxu0 %v448
    %693 = vmatpush.msra.mxu0 %v444
    %694 = vmatpush.msra.mxu0 %v440
    %695 = vmatpush.msra.mxu0 %v436
    %696 = vmatpush.msra.mxu0 %v432
    %697 = vmatpush.msra.mxu0 %v428
    %698 = vmatpush.msra.mxu0 %v424
    %699 = vmatpush.msra.mxu0 %v420
    %700 = vmatpush.msra.mxu0 %v416
    %701 = vmatpush.msra.mxu0 %v412
    %702 = vmatpush.msra.mxu0 %v408
    %703 = vmatpush.msra.mxu0 %v404
    %704 = vmatpush.msra.mxu0 %v400
    %705 = vmatpush.msra.mxu0 %v396
    %706 = vmatmul.f32.gmra.mxu0 %v619
    %v707 = vpop.f32.mrf.mxu0
    %v708 = vadd.f32 0.0, %v707
    %709 = vdwg.mxu0
    %v714 = vrot.slane %v668, 6
    %v715 = vrot.slane %v688, 4
    %v716 = vrot.slane %v708, 2
    %v717 = vsel %vm339, %v648, %v714
    %v718 = vsel %vm341, %v715, %v716
    %v719 = vsel %vm343, %v717, %v718
    %v721 = vadd.f32 %v629, %v719
    %v722 = vxor.u32 %v721, 2147483648
    %v723 = vmul.f32 %v722, 1.442695
    %v724 = vpow.pop %v723
    %v725 = vadd.f32 %v724, 1.0
    %v726 = vrcp.pop %v725
    %v727 = vmul.f32 %v725, %v726
    %v728 = vsub.f32 1.0, %v727
    %v729 = vmul.f32 %v726, %v728
    %v730 = vadd.f32 %v726, %v729
    %vm731 = vweird.f32 %v725
    %vm732 = vweird.f32 %v726
    %vm733 = vmor %vm731, %vm732
    %v734 = vsel %vm733, %v726, %v730
    %v735 = vand.u32 2147483647, %v725
    %vm736 = vcmp.eq.f32.partialorder %v735, 8.507059e+37
    %v737 = vand.u32 %v725, 2147483648
    %v738 = vor.u32 1.1754944e-38, %v737
    %v739 = vsel %vm736, %v738, %v734
    %v740 = vmul.f32 1.0, %v739
    %v742 = vrot.slane %v721, 2
    %v744 = vxor.u32 %v742, 2147483648
    %v745 = vmul.f32 %v744, 1.442695
    %v746 = vpow.pop %v745
    %v747 = vadd.f32 %v746, 1.0
    %v748 = vrcp.pop %v747
    %v749 = vmul.f32 %v747, %v748
    %v750 = vsub.f32 1.0, %v749
    %v751 = vmul.f32 %v748, %v750
    %v752 = vadd.f32 %v748, %v751
    %vm753 = vweird.f32 %v747
    %vm754 = vweird.f32 %v748
    %vm755 = vmor %vm753, %vm754
    %v756 = vsel %vm755, %v748, %v752
    %v757 = vand.u32 2147483647, %v747
    %vm758 = vcmp.eq.f32.partialorder %v757, 8.507059e+37
    %v759 = vand.u32 %v747, 2147483648
    %v760 = vor.u32 1.1754944e-38, %v759
    %v761 = vsel %vm758, %v760, %v756
    %v762 = vmul.f32 1.0, %v761
    %v763 = vrot.slane %v721, 4
    %v765 = vtanh.pop %v763
    %v766 = vrot.slane %v721, 6
    %v768 = vxor.u32 %v766, 2147483648
    %v769 = vmul.f32 %v768, 1.442695
    %v770 = vpow.pop %v769
    %v771 = vadd.f32 %v770, 1.0
    %v772 = vrcp.pop %v771
    %v773 = vmul.f32 %v771, %v772
    %v774 = vsub.f32 1.0, %v773
    %v775 = vmul.f32 %v772, %v774
    %v776 = vadd.f32 %v772, %v775
    %vm777 = vweird.f32 %v771
    %vm778 = vweird.f32 %v772
    %vm779 = vmor %vm777, %vm778
    %v780 = vsel %vm779, %v772, %v776
    %v781 = vand.u32 2147483647, %v771
    %vm782 = vcmp.eq.f32.partialorder %v781, 8.507059e+37
    %v783 = vand.u32 %v771, 2147483648
    %v784 = vor.u32 1.1754944e-38, %v783
    %v785 = vsel %vm782, %v784, %v780
    %v786 = vmul.f32 1.0, %v785
    %v787 = vmul.f32 %v762, %v617
    %v788 = vmul.f32 %v740, %v765
    %v789 = vadd.f32 %v787, %v788
    %v790 = vtanh.pop %v789
    %v791 = vmul.f32 %v786, %v790
    %s792 = scalar_lea.vmem %s1, 2
    %v793 = vld [vmem:[%s792] sm:$0x3]
    %795 = vset.pattern.permute.xlu0 0
    %796 = vperm.xlu0 %795, %v793
    %v797 = vpop.permute.xlu0 %796
    %v799 = vmul.f32 %v791, %v797
    %s800 = scalar_lea.vmem [#allocation3], 2
    %801 = vst [vmem:[%s800] sm:$0x3] %v799
    %s802 = scalar_lea.vmem [#allocation2], 16
    %v803 = vld [vmem:[%s802] sm:$0xff]
    %804 = vmatpush.msra.mxu0 %v453
    %805 = vmatpush.msra.mxu0 %v449
    %806 = vmatpush.msra.mxu0 %v445
    %807 = vmatpush.msra.mxu0 %v441
    %808 = vmatpush.msra.mxu0 %v437
    %809 = vmatpush.msra.mxu0 %v433
    %810 = vmatpush.msra.mxu0 %v429
    %811 = vmatpush.msra.mxu0 %v425
    %812 = vmatpush.msra.mxu0 %v421
    %813 = vmatpush.msra.mxu0 %v417
    %814 = vmatpush.msra.mxu0 %v413
    %815 = vmatpush.msra.mxu0 %v409
    %816 = vmatpush.msra.mxu0 %v405
    %817 = vmatpush.msra.mxu0 %v401
    %818 = vmatpush.msra.mxu0 %v397
    %819 = vmatpush.msra.mxu0 %v393
    %820 = vmatmul.f32.gmra.mxu0 %v791
    %v821 = vpop.f32.mrf.mxu0
    %v822 = vadd.f32 0.0, %v821
    %823 = vdwg.mxu0
    %824 = vmatpush.msra.mxu0 %v454
    %825 = vmatpush.msra.mxu0 %v450
    %826 = vmatpush.msra.mxu0 %v446
    %827 = vmatpush.msra.mxu0 %v442
    %828 = vmatpush.msra.mxu0 %v438
    %829 = vmatpush.msra.mxu0 %v434
    %830 = vmatpush.msra.mxu0 %v430
    %831 = vmatpush.msra.mxu0 %v426
    %832 = vmatpush.msra.mxu0 %v422
    %833 = vmatpush.msra.mxu0 %v418
    %834 = vmatpush.msra.mxu0 %v414
    %835 = vmatpush.msra.mxu0 %v410
    %836 = vmatpush.msra.mxu0 %v406
    %837 = vmatpush.msra.mxu0 %v402
    %838 = vmatpush.msra.mxu0 %v398
    %839 = vmatpush.msra.mxu0 %v394
    %840 = vmatmul.f32.gmra.mxu0 %v791
    %v841 = vpop.f32.mrf.mxu0
    %v842 = vadd.f32 0.0, %v841
    %843 = vdwg.mxu0
    %844 = vmatpush.msra.mxu0 %v455
    %845 = vmatpush.msra.mxu0 %v451
    %846 = vmatpush.msra.mxu0 %v447
    %847 = vmatpush.msra.mxu0 %v443
    %848 = vmatpush.msra.mxu0 %v439
    %849 = vmatpush.msra.mxu0 %v435
    %850 = vmatpush.msra.mxu0 %v431
    %851 = vmatpush.msra.mxu0 %v427
    %852 = vmatpush.msra.mxu0 %v423
    %853 = vmatpush.msra.mxu0 %v419
    %854 = vmatpush.msra.mxu0 %v415
    %855 = vmatpush.msra.mxu0 %v411
    %856 = vmatpush.msra.mxu0 %v407
    %857 = vmatpush.msra.mxu0 %v403
    %858 = vmatpush.msra.mxu0 %v399
    %859 = vmatpush.msra.mxu0 %v395
    %860 = vmatmul.f32.gmra.mxu0 %v791
    %v861 = vpop.f32.mrf.mxu0
    %v862 = vadd.f32 0.0, %v861
    %863 = vdwg.mxu0
    %864 = vmatpush.msra.mxu0 %v456
    %865 = vmatpush.msra.mxu0 %v452
    %866 = vmatpush.msra.mxu0 %v448
    %867 = vmatpush.msra.mxu0 %v444
    %868 = vmatpush.msra.mxu0 %v440
    %869 = vmatpush.msra.mxu0 %v436
    %870 = vmatpush.msra.mxu0 %v432
    %871 = vmatpush.msra.mxu0 %v428
    %872 = vmatpush.msra.mxu0 %v424
    %873 = vmatpush.msra.mxu0 %v420
    %874 = vmatpush.msra.mxu0 %v416
    %875 = vmatpush.msra.mxu0 %v412
    %876 = vmatpush.msra.mxu0 %v408
    %877 = vmatpush.msra.mxu0 %v404
    %878 = vmatpush.msra.mxu0 %v400
    %879 = vmatpush.msra.mxu0 %v396
    %880 = vmatmul.f32.gmra.mxu0 %v791
    %v881 = vpop.f32.mrf.mxu0
    %v882 = vadd.f32 0.0, %v881
    %883 = vdwg.mxu0
    %v888 = vrot.slane %v842, 6
    %v889 = vrot.slane %v862, 4
    %v890 = vrot.slane %v882, 2
    %v891 = vsel %vm339, %v822, %v888
    %v892 = vsel %vm341, %v889, %v890
    %v893 = vsel %vm343, %v891, %v892
    %v895 = vadd.f32 %v803, %v893
    %v896 = vxor.u32 %v895, 2147483648
    %v897 = vmul.f32 %v896, 1.442695
    %v898 = vpow.pop %v897
    %v899 = vadd.f32 %v898, 1.0
    %v900 = vrcp.pop %v899
    %v901 = vmul.f32 %v899, %v900
    %v902 = vsub.f32 1.0, %v901
    %v903 = vmul.f32 %v900, %v902
    %v904 = vadd.f32 %v900, %v903
    %vm905 = vweird.f32 %v899
    %vm906 = vweird.f32 %v900
    %vm907 = vmor %vm905, %vm906
    %v908 = vsel %vm907, %v900, %v904
    %v909 = vand.u32 2147483647, %v899
    %vm910 = vcmp.eq.f32.partialorder %v909, 8.507059e+37
    %v911 = vand.u32 %v899, 2147483648
    %v912 = vor.u32 1.1754944e-38, %v911
    %v913 = vsel %vm910, %v912, %v908
    %v914 = vmul.f32 1.0, %v913
    %v916 = vrot.slane %v895, 2
    %v918 = vxor.u32 %v916, 2147483648
    %v919 = vmul.f32 %v918, 1.442695
    %v920 = vpow.pop %v919
    %v921 = vadd.f32 %v920, 1.0
    %v922 = vrcp.pop %v921
    %v923 = vmul.f32 %v921, %v922
    %v924 = vsub.f32 1.0, %v923
    %v925 = vmul.f32 %v922, %v924
    %v926 = vadd.f32 %v922, %v925
    %vm927 = vweird.f32 %v921
    %vm928 = vweird.f32 %v922
    %vm929 = vmor %vm927, %vm928
    %v930 = vsel %vm929, %v922, %v926
    %v931 = vand.u32 2147483647, %v921
    %vm932 = vcmp.eq.f32.partialorder %v931, 8.507059e+37
    %v933 = vand.u32 %v921, 2147483648
    %v934 = vor.u32 1.1754944e-38, %v933
    %v935 = vsel %vm932, %v934, %v930
    %v936 = vmul.f32 1.0, %v935
    %v937 = vrot.slane %v895, 4
    %v939 = vtanh.pop %v937
    %v940 = vrot.slane %v895, 6
    %v942 = vxor.u32 %v940, 2147483648
    %v943 = vmul.f32 %v942, 1.442695
    %v944 = vpow.pop %v943
    %v945 = vadd.f32 %v944, 1.0
    %v946 = vrcp.pop %v945
    %v947 = vmul.f32 %v945, %v946
    %v948 = vsub.f32 1.0, %v947
    %v949 = vmul.f32 %v946, %v948
    %v950 = vadd.f32 %v946, %v949
    %vm951 = vweird.f32 %v945
    %vm952 = vweird.f32 %v946
    %vm953 = vmor %vm951, %vm952
    %v954 = vsel %vm953, %v946, %v950
    %v955 = vand.u32 2147483647, %v945
    %vm956 = vcmp.eq.f32.partialorder %v955, 8.507059e+37
    %v957 = vand.u32 %v945, 2147483648
    %v958 = vor.u32 1.1754944e-38, %v957
    %v959 = vsel %vm956, %v958, %v954
    %v960 = vmul.f32 1.0, %v959
    %v961 = vmul.f32 %v936, %v789
    %v962 = vmul.f32 %v914, %v939
    %v963 = vadd.f32 %v961, %v962
    %v964 = vtanh.pop %v963
    %v965 = vmul.f32 %v960, %v964
    %s966 = scalar_lea.vmem %s1, 4
    %v967 = vld [vmem:[%s966] sm:$0x3]
    %969 = vset.pattern.permute.xlu0 0
    %970 = vperm.xlu0 %969, %v967
    %v971 = vpop.permute.xlu0 %970
    %v973 = vmul.f32 %v965, %v971
    %s974 = scalar_lea.vmem [#allocation3], 4
    %975 = vst [vmem:[%s974] sm:$0x3] %v973
    %s976 = scalar_lea.vmem [#allocation2], 24
    %v977 = vld [vmem:[%s976] sm:$0xff]
    %978 = vmatpush.msra.mxu0 %v453
    %979 = vmatpush.msra.mxu0 %v449
    %980 = vmatpush.msra.mxu0 %v445
    %981 = vmatpush.msra.mxu0 %v441
    %982 = vmatpush.msra.mxu0 %v437
    %983 = vmatpush.msra.mxu0 %v433
    %984 = vmatpush.msra.mxu0 %v429
    %985 = vmatpush.msra.mxu0 %v425
    %986 = vmatpush.msra.mxu0 %v421
    %987 = vmatpush.msra.mxu0 %v417
    %988 = vmatpush.msra.mxu0 %v413
    %989 = vmatpush.msra.mxu0 %v409
    %990 = vmatpush.msra.mxu0 %v405
    %991 = vmatpush.msra.mxu0 %v401
    %992 = vmatpush.msra.mxu0 %v397
    %993 = vmatpush.msra.mxu0 %v393
    %994 = vmatmul.f32.gmra.mxu0 %v965
    %v995 = vpop.f32.mrf.mxu0
    %v996 = vadd.f32 0.0, %v995
    %997 = vdwg.mxu0
    %998 = vmatpush.msra.mxu0 %v454
    %999 = vmatpush.msra.mxu0 %v450
    %1000 = vmatpush.msra.mxu0 %v446
    %1001 = vmatpush.msra.mxu0 %v442
    %1002 = vmatpush.msra.mxu0 %v438
    %1003 = vmatpush.msra.mxu0 %v434
    %1004 = vmatpush.msra.mxu0 %v430
    %1005 = vmatpush.msra.mxu0 %v426
    %1006 = vmatpush.msra.mxu0 %v422
    %1007 = vmatpush.msra.mxu0 %v418
    %1008 = vmatpush.msra.mxu0 %v414
    %1009 = vmatpush.msra.mxu0 %v410
    %1010 = vmatpush.msra.mxu0 %v406
    %1011 = vmatpush.msra.mxu0 %v402
    %1012 = vmatpush.msra.mxu0 %v398
    %1013 = vmatpush.msra.mxu0 %v394
    %1014 = vmatmul.f32.gmra.mxu0 %v965
    %v1015 = vpop.f32.mrf.mxu0
    %v1016 = vadd.f32 0.0, %v1015
    %1017 = vdwg.mxu0
    %1018 = vmatpush.msra.mxu0 %v455
    %1019 = vmatpush.msra.mxu0 %v451
    %1020 = vmatpush.msra.mxu0 %v447
    %1021 = vmatpush.msra.mxu0 %v443
    %1022 = vmatpush.msra.mxu0 %v439
    %1023 = vmatpush.msra.mxu0 %v435
    %1024 = vmatpush.msra.mxu0 %v431
    %1025 = vmatpush.msra.mxu0 %v427
    %1026 = vmatpush.msra.mxu0 %v423
    %1027 = vmatpush.msra.mxu0 %v419
    %1028 = vmatpush.msra.mxu0 %v415
    %1029 = vmatpush.msra.mxu0 %v411
    %1030 = vmatpush.msra.mxu0 %v407
    %1031 = vmatpush.msra.mxu0 %v403
    %1032 = vmatpush.msra.mxu0 %v399
    %1033 = vmatpush.msra.mxu0 %v395
    %1034 = vmatmul.f32.gmra.mxu0 %v965
    %v1035 = vpop.f32.mrf.mxu0
    %v1036 = vadd.f32 0.0, %v1035
    %1037 = vdwg.mxu0
    %1038 = vmatpush.msra.mxu0 %v456
    %1039 = vmatpush.msra.mxu0 %v452
    %1040 = vmatpush.msra.mxu0 %v448
    %1041 = vmatpush.msra.mxu0 %v444
    %1042 = vmatpush.msra.mxu0 %v440
    %1043 = vmatpush.msra.mxu0 %v436
    %1044 = vmatpush.msra.mxu0 %v432
    %1045 = vmatpush.msra.mxu0 %v428
    %1046 = vmatpush.msra.mxu0 %v424
    %1047 = vmatpush.msra.mxu0 %v420
    %1048 = vmatpush.msra.mxu0 %v416
    %1049 = vmatpush.msra.mxu0 %v412
    %1050 = vmatpush.msra.mxu0 %v408
    %1051 = vmatpush.msra.mxu0 %v404
    %1052 = vmatpush.msra.mxu0 %v400
    %1053 = vmatpush.msra.mxu0 %v396
    %1054 = vmatmul.f32.gmra.mxu0 %v965
    %v1055 = vpop.f32.mrf.mxu0
    %v1056 = vadd.f32 0.0, %v1055
    %1057 = vdwg.mxu0
    %v1062 = vrot.slane %v1016, 6
    %v1063 = vrot.slane %v1036, 4
    %v1064 = vrot.slane %v1056, 2
    %v1065 = vsel %vm339, %v996, %v1062
    %v1066 = vsel %vm341, %v1063, %v1064
    %v1067 = vsel %vm343, %v1065, %v1066
    %v1069 = vadd.f32 %v977, %v1067
    %v1070 = vxor.u32 %v1069, 2147483648
    %v1071 = vmul.f32 %v1070, 1.442695
    %v1072 = vpow.pop %v1071
    %v1073 = vadd.f32 %v1072, 1.0
    %v1074 = vrcp.pop %v1073
    %v1075 = vmul.f32 %v1073, %v1074
    %v1076 = vsub.f32 1.0, %v1075
    %v1077 = vmul.f32 %v1074, %v1076
    %v1078 = vadd.f32 %v1074, %v1077
    %vm1079 = vweird.f32 %v1073
    %vm1080 = vweird.f32 %v1074
    %vm1081 = vmor %vm1079, %vm1080
    %v1082 = vsel %vm1081, %v1074, %v1078
    %v1083 = vand.u32 2147483647, %v1073
    %vm1084 = vcmp.eq.f32.partialorder %v1083, 8.507059e+37
    %v1085 = vand.u32 %v1073, 2147483648
    %v1086 = vor.u32 1.1754944e-38, %v1085
    %v1087 = vsel %vm1084, %v1086, %v1082
    %v1088 = vmul.f32 1.0, %v1087
    %v1090 = vrot.slane %v1069, 2
    %v1092 = vxor.u32 %v1090, 2147483648
    %v1093 = vmul.f32 %v1092, 1.442695
    %v1094 = vpow.pop %v1093
    %v1095 = vadd.f32 %v1094, 1.0
    %v1096 = vrcp.pop %v1095
    %v1097 = vmul.f32 %v1095, %v1096
    %v1098 = vsub.f32 1.0, %v1097
    %v1099 = vmul.f32 %v1096, %v1098
    %v1100 = vadd.f32 %v1096, %v1099
    %vm1101 = vweird.f32 %v1095
    %vm1102 = vweird.f32 %v1096
    %vm1103 = vmor %vm1101, %vm1102
    %v1104 = vsel %vm1103, %v1096, %v1100
    %v1105 = vand.u32 2147483647, %v1095
    %vm1106 = vcmp.eq.f32.partialorder %v1105, 8.507059e+37
    %v1107 = vand.u32 %v1095, 2147483648
    %v1108 = vor.u32 1.1754944e-38, %v1107
    %v1109 = vsel %vm1106, %v1108, %v1104
    %v1110 = vmul.f32 1.0, %v1109
    %v1111 = vrot.slane %v1069, 4
    %v1113 = vtanh.pop %v1111
    %v1114 = vrot.slane %v1069, 6
    %v1116 = vxor.u32 %v1114, 2147483648
    %v1117 = vmul.f32 %v1116, 1.442695
    %v1118 = vpow.pop %v1117
    %v1119 = vadd.f32 %v1118, 1.0
    %v1120 = vrcp.pop %v1119
    %v1121 = vmul.f32 %v1119, %v1120
    %v1122 = vsub.f32 1.0, %v1121
    %v1123 = vmul.f32 %v1120, %v1122
    %v1124 = vadd.f32 %v1120, %v1123
    %vm1125 = vweird.f32 %v1119
    %vm1126 = vweird.f32 %v1120
    %vm1127 = vmor %vm1125, %vm1126
    %v1128 = vsel %vm1127, %v1120, %v1124
    %v1129 = vand.u32 2147483647, %v1119
    %vm1130 = vcmp.eq.f32.partialorder %v1129, 8.507059e+37
    %v1131 = vand.u32 %v1119, 2147483648
    %v1132 = vor.u32 1.1754944e-38, %v1131
    %v1133 = vsel %vm1130, %v1132, %v1128
    %v1134 = vmul.f32 1.0, %v1133
    %v1135 = vmul.f32 %v1110, %v963
    %v1136 = vmul.f32 %v1088, %v1113
    %v1137 = vadd.f32 %v1135, %v1136
    %v1138 = vtanh.pop %v1137
    %v1139 = vmul.f32 %v1134, %v1138
    %s1140 = scalar_lea.vmem %s1, 6
    %v1141 = vld [vmem:[%s1140] sm:$0x3]
    %1143 = vset.pattern.permute.xlu0 0
    %1144 = vperm.xlu0 %1143, %v1141
    %v1145 = vpop.permute.xlu0 %1144
    %v1147 = vmul.f32 %v1139, %v1145
    %s1148 = scalar_lea.vmem [#allocation3], 6
    %1149 = vst [vmem:[%s1148] sm:$0x3] %v1147
    %s1150 = scalar_lea.vmem [#allocation2], 32
    %v1151 = vld [vmem:[%s1150] sm:$0xff]
    %1152 = vmatpush.msra.mxu0 %v453
    %1153 = vmatpush.msra.mxu0 %v449
    %1154 = vmatpush.msra.mxu0 %v445
    %1155 = vmatpush.msra.mxu0 %v441
    %1156 = vmatpush.msra.mxu0 %v437
    %1157 = vmatpush.msra.mxu0 %v433
    %1158 = vmatpush.msra.mxu0 %v429
    %1159 = vmatpush.msra.mxu0 %v425
    %1160 = vmatpush.msra.mxu0 %v421
    %1161 = vmatpush.msra.mxu0 %v417
    %1162 = vmatpush.msra.mxu0 %v413
    %1163 = vmatpush.msra.mxu0 %v409
    %1164 = vmatpush.msra.mxu0 %v405
    %1165 = vmatpush.msra.mxu0 %v401
    %1166 = vmatpush.msra.mxu0 %v397
    %1167 = vmatpush.msra.mxu0 %v393
    %1168 = vmatmul.f32.gmra.mxu0 %v1139
    %v1169 = vpop.f32.mrf.mxu0
    %v1170 = vadd.f32 0.0, %v1169
    %1171 = vdwg.mxu0
    %1172 = vmatpush.msra.mxu0 %v454
    %1173 = vmatpush.msra.mxu0 %v450
    %1174 = vmatpush.msra.mxu0 %v446
    %1175 = vmatpush.msra.mxu0 %v442
    %1176 = vmatpush.msra.mxu0 %v438
    %1177 = vmatpush.msra.mxu0 %v434
    %1178 = vmatpush.msra.mxu0 %v430
    %1179 = vmatpush.msra.mxu0 %v426
    %1180 = vmatpush.msra.mxu0 %v422
    %1181 = vmatpush.msra.mxu0 %v418
    %1182 = vmatpush.msra.mxu0 %v414
    %1183 = vmatpush.msra.mxu0 %v410
    %1184 = vmatpush.msra.mxu0 %v406
    %1185 = vmatpush.msra.mxu0 %v402
    %1186 = vmatpush.msra.mxu0 %v398
    %1187 = vmatpush.msra.mxu0 %v394
    %1188 = vmatmul.f32.gmra.mxu0 %v1139
    %v1189 = vpop.f32.mrf.mxu0
    %v1190 = vadd.f32 0.0, %v1189
    %1191 = vdwg.mxu0
    %1192 = vmatpush.msra.mxu0 %v455
    %1193 = vmatpush.msra.mxu0 %v451
    %1194 = vmatpush.msra.mxu0 %v447
    %1195 = vmatpush.msra.mxu0 %v443
    %1196 = vmatpush.msra.mxu0 %v439
    %1197 = vmatpush.msra.mxu0 %v435
    %1198 = vmatpush.msra.mxu0 %v431
    %1199 = vmatpush.msra.mxu0 %v427
    %1200 = vmatpush.msra.mxu0 %v423
    %1201 = vmatpush.msra.mxu0 %v419
    %1202 = vmatpush.msra.mxu0 %v415
    %1203 = vmatpush.msra.mxu0 %v411
    %1204 = vmatpush.msra.mxu0 %v407
    %1205 = vmatpush.msra.mxu0 %v403
    %1206 = vmatpush.msra.mxu0 %v399
    %1207 = vmatpush.msra.mxu0 %v395
    %1208 = vmatmul.f32.gmra.mxu0 %v1139
    %v1209 = vpop.f32.mrf.mxu0
    %v1210 = vadd.f32 0.0, %v1209
    %1211 = vdwg.mxu0
    %1212 = vmatpush.msra.mxu0 %v456
    %1213 = vmatpush.msra.mxu0 %v452
    %1214 = vmatpush.msra.mxu0 %v448
    %1215 = vmatpush.msra.mxu0 %v444
    %1216 = vmatpush.msra.mxu0 %v440
    %1217 = vmatpush.msra.mxu0 %v436
    %1218 = vmatpush.msra.mxu0 %v432
    %1219 = vmatpush.msra.mxu0 %v428
    %1220 = vmatpush.msra.mxu0 %v424
    %1221 = vmatpush.msra.mxu0 %v420
    %1222 = vmatpush.msra.mxu0 %v416
    %1223 = vmatpush.msra.mxu0 %v412
    %1224 = vmatpush.msra.mxu0 %v408
    %1225 = vmatpush.msra.mxu0 %v404
    %1226 = vmatpush.msra.mxu0 %v400
    %1227 = vmatpush.msra.mxu0 %v396
    %1228 = vmatmul.f32.gmra.mxu0 %v1139
    %v1229 = vpop.f32.mrf.mxu0
    %v1230 = vadd.f32 0.0, %v1229
    %1231 = vdwg.mxu0
    %v1236 = vrot.slane %v1190, 6
    %v1237 = vrot.slane %v1210, 4
    %v1238 = vrot.slane %v1230, 2
    %v1239 = vsel %vm339, %v1170, %v1236
    %v1240 = vsel %vm341, %v1237, %v1238
    %v1241 = vsel %vm343, %v1239, %v1240
    %v1243 = vadd.f32 %v1151, %v1241
    %v1244 = vxor.u32 %v1243, 2147483648
    %v1245 = vmul.f32 %v1244, 1.442695
    %v1246 = vpow.pop %v1245
    %v1247 = vadd.f32 %v1246, 1.0
    %v1248 = vrcp.pop %v1247
    %v1249 = vmul.f32 %v1247, %v1248
    %v1250 = vsub.f32 1.0, %v1249
    %v1251 = vmul.f32 %v1248, %v1250
    %v1252 = vadd.f32 %v1248, %v1251
    %vm1253 = vweird.f32 %v1247
    %vm1254 = vweird.f32 %v1248
    %vm1255 = vmor %vm1253, %vm1254
    %v1256 = vsel %vm1255, %v1248, %v1252
    %v1257 = vand.u32 2147483647, %v1247
    %vm1258 = vcmp.eq.f32.partialorder %v1257, 8.507059e+37
    %v1259 = vand.u32 %v1247, 2147483648
    %v1260 = vor.u32 1.1754944e-38, %v1259
    %v1261 = vsel %vm1258, %v1260, %v1256
    %v1262 = vmul.f32 1.0, %v1261
    %v1264 = vrot.slane %v1243, 2
    %v1266 = vxor.u32 %v1264, 2147483648
    %v1267 = vmul.f32 %v1266, 1.442695
    %v1268 = vpow.pop %v1267
    %v1269 = vadd.f32 %v1268, 1.0
    %v1270 = vrcp.pop %v1269
    %v1271 = vmul.f32 %v1269, %v1270
    %v1272 = vsub.f32 1.0, %v1271
    %v1273 = vmul.f32 %v1270, %v1272
    %v1274 = vadd.f32 %v1270, %v1273
    %vm1275 = vweird.f32 %v1269
    %vm1276 = vweird.f32 %v1270
    %vm1277 = vmor %vm1275, %vm1276
    %v1278 = vsel %vm1277, %v1270, %v1274
    %v1279 = vand.u32 2147483647, %v1269
    %vm1280 = vcmp.eq.f32.partialorder %v1279, 8.507059e+37
    %v1281 = vand.u32 %v1269, 2147483648
    %v1282 = vor.u32 1.1754944e-38, %v1281
    %v1283 = vsel %vm1280, %v1282, %v1278
    %v1284 = vmul.f32 1.0, %v1283
    %v1285 = vrot.slane %v1243, 4
    %v1287 = vtanh.pop %v1285
    %v1288 = vrot.slane %v1243, 6
    %v1290 = vxor.u32 %v1288, 2147483648
    %v1291 = vmul.f32 %v1290, 1.442695
    %v1292 = vpow.pop %v1291
    %v1293 = vadd.f32 %v1292, 1.0
    %v1294 = vrcp.pop %v1293
    %v1295 = vmul.f32 %v1293, %v1294
    %v1296 = vsub.f32 1.0, %v1295
    %v1297 = vmul.f32 %v1294, %v1296
    %v1298 = vadd.f32 %v1294, %v1297
    %vm1299 = vweird.f32 %v1293
    %vm1300 = vweird.f32 %v1294
    %vm1301 = vmor %vm1299, %vm1300
    %v1302 = vsel %vm1301, %v1294, %v1298
    %v1303 = vand.u32 2147483647, %v1293
    %vm1304 = vcmp.eq.f32.partialorder %v1303, 8.507059e+37
    %v1305 = vand.u32 %v1293, 2147483648
    %v1306 = vor.u32 1.1754944e-38, %v1305
    %v1307 = vsel %vm1304, %v1306, %v1302
    %v1308 = vmul.f32 1.0, %v1307
    %v1309 = vmul.f32 %v1284, %v1137
    %v1310 = vmul.f32 %v1262, %v1287
    %v1311 = vadd.f32 %v1309, %v1310
    %v1312 = vtanh.pop %v1311
    %v1313 = vmul.f32 %v1308, %v1312
    %s1314 = scalar_lea.vmem %s1, 8
    %v1315 = vld [vmem:[%s1314] sm:$0x3]
    %1317 = vset.pattern.permute.xlu0 0
    %1318 = vperm.xlu0 %1317, %v1315
    %v1319 = vpop.permute.xlu0 %1318
    %v1321 = vmul.f32 %v1313, %v1319
    %s1322 = scalar_lea.vmem [#allocation3], 8
    %1323 = vst [vmem:[%s1322] sm:$0x3] %v1321
    %s1324 = scalar_lea.vmem [#allocation2], 40
    %v1325 = vld [vmem:[%s1324] sm:$0xff]
    %1326 = vmatpush.msra.mxu0 %v453
    %1327 = vmatpush.msra.mxu0 %v449
    %1328 = vmatpush.msra.mxu0 %v445
    %1329 = vmatpush.msra.mxu0 %v441
    %1330 = vmatpush.msra.mxu0 %v437
    %1331 = vmatpush.msra.mxu0 %v433
    %1332 = vmatpush.msra.mxu0 %v429
    %1333 = vmatpush.msra.mxu0 %v425
    %1334 = vmatpush.msra.mxu0 %v421
    %1335 = vmatpush.msra.mxu0 %v417
    %1336 = vmatpush.msra.mxu0 %v413
    %1337 = vmatpush.msra.mxu0 %v409
    %1338 = vmatpush.msra.mxu0 %v405
    %1339 = vmatpush.msra.mxu0 %v401
    %1340 = vmatpush.msra.mxu0 %v397
    %1341 = vmatpush.msra.mxu0 %v393
    %1342 = vmatmul.f32.gmra.mxu0 %v1313
    %v1343 = vpop.f32.mrf.mxu0
    %v1344 = vadd.f32 0.0, %v1343
    %1345 = vdwg.mxu0
    %1346 = vmatpush.msra.mxu0 %v454
    %1347 = vmatpush.msra.mxu0 %v450
    %1348 = vmatpush.msra.mxu0 %v446
    %1349 = vmatpush.msra.mxu0 %v442
    %1350 = vmatpush.msra.mxu0 %v438
    %1351 = vmatpush.msra.mxu0 %v434
    %1352 = vmatpush.msra.mxu0 %v430
    %1353 = vmatpush.msra.mxu0 %v426
    %1354 = vmatpush.msra.mxu0 %v422
    %1355 = vmatpush.msra.mxu0 %v418
    %1356 = vmatpush.msra.mxu0 %v414
    %1357 = vmatpush.msra.mxu0 %v410
    %1358 = vmatpush.msra.mxu0 %v406
    %1359 = vmatpush.msra.mxu0 %v402
    %1360 = vmatpush.msra.mxu0 %v398
    %1361 = vmatpush.msra.mxu0 %v394
    %1362 = vmatmul.f32.gmra.mxu0 %v1313
    %v1363 = vpop.f32.mrf.mxu0
    %v1364 = vadd.f32 0.0, %v1363
    %1365 = vdwg.mxu0
    %1366 = vmatpush.msra.mxu0 %v455
    %1367 = vmatpush.msra.mxu0 %v451
    %1368 = vmatpush.msra.mxu0 %v447
    %1369 = vmatpush.msra.mxu0 %v443
    %1370 = vmatpush.msra.mxu0 %v439
    %1371 = vmatpush.msra.mxu0 %v435
    %1372 = vmatpush.msra.mxu0 %v431
    %1373 = vmatpush.msra.mxu0 %v427
    %1374 = vmatpush.msra.mxu0 %v423
    %1375 = vmatpush.msra.mxu0 %v419
    %1376 = vmatpush.msra.mxu0 %v415
    %1377 = vmatpush.msra.mxu0 %v411
    %1378 = vmatpush.msra.mxu0 %v407
    %1379 = vmatpush.msra.mxu0 %v403
    %1380 = vmatpush.msra.mxu0 %v399
    %1381 = vmatpush.msra.mxu0 %v395
    %1382 = vmatmul.f32.gmra.mxu0 %v1313
    %v1383 = vpop.f32.mrf.mxu0
    %v1384 = vadd.f32 0.0, %v1383
    %1385 = vdwg.mxu0
    %1386 = vmatpush.msra.mxu0 %v456
    %1387 = vmatpush.msra.mxu0 %v452
    %1388 = vmatpush.msra.mxu0 %v448
    %1389 = vmatpush.msra.mxu0 %v444
    %1390 = vmatpush.msra.mxu0 %v440
    %1391 = vmatpush.msra.mxu0 %v436
    %1392 = vmatpush.msra.mxu0 %v432
    %1393 = vmatpush.msra.mxu0 %v428
    %1394 = vmatpush.msra.mxu0 %v424
    %1395 = vmatpush.msra.mxu0 %v420
    %1396 = vmatpush.msra.mxu0 %v416
    %1397 = vmatpush.msra.mxu0 %v412
    %1398 = vmatpush.msra.mxu0 %v408
    %1399 = vmatpush.msra.mxu0 %v404
    %1400 = vmatpush.msra.mxu0 %v400
    %1401 = vmatpush.msra.mxu0 %v396
    %1402 = vmatmul.f32.gmra.mxu0 %v1313
    %v1403 = vpop.f32.mrf.mxu0
    %v1404 = vadd.f32 0.0, %v1403
    %1405 = vdwg.mxu0
    %v1410 = vrot.slane %v1364, 6
    %v1411 = vrot.slane %v1384, 4
    %v1412 = vrot.slane %v1404, 2
    %v1413 = vsel %vm339, %v1344, %v1410
    %v1414 = vsel %vm341, %v1411, %v1412
    %v1415 = vsel %vm343, %v1413, %v1414
    %v1417 = vadd.f32 %v1325, %v1415
    %v1418 = vxor.u32 %v1417, 2147483648
    %v1419 = vmul.f32 %v1418, 1.442695
    %v1420 = vpow.pop %v1419
    %v1421 = vadd.f32 %v1420, 1.0
    %v1422 = vrcp.pop %v1421
    %v1423 = vmul.f32 %v1421, %v1422
    %v1424 = vsub.f32 1.0, %v1423
    %v1425 = vmul.f32 %v1422, %v1424
    %v1426 = vadd.f32 %v1422, %v1425
    %vm1427 = vweird.f32 %v1421
    %vm1428 = vweird.f32 %v1422
    %vm1429 = vmor %vm1427, %vm1428
    %v1430 = vsel %vm1429, %v1422, %v1426
    %v1431 = vand.u32 2147483647, %v1421
    %vm1432 = vcmp.eq.f32.partialorder %v1431, 8.507059e+37
    %v1433 = vand.u32 %v1421, 2147483648
    %v1434 = vor.u32 1.1754944e-38, %v1433
    %v1435 = vsel %vm1432, %v1434, %v1430
    %v1436 = vmul.f32 1.0, %v1435
    %v1438 = vrot.slane %v1417, 2
    %v1440 = vxor.u32 %v1438, 2147483648
    %v1441 = vmul.f32 %v1440, 1.442695
    %v1442 = vpow.pop %v1441
    %v1443 = vadd.f32 %v1442, 1.0
    %v1444 = vrcp.pop %v1443
    %v1445 = vmul.f32 %v1443, %v1444
    %v1446 = vsub.f32 1.0, %v1445
    %v1447 = vmul.f32 %v1444, %v1446
    %v1448 = vadd.f32 %v1444, %v1447
    %vm1449 = vweird.f32 %v1443
    %vm1450 = vweird.f32 %v1444
    %vm1451 = vmor %vm1449, %vm1450
    %v1452 = vsel %vm1451, %v1444, %v1448
    %v1453 = vand.u32 2147483647, %v1443
    %vm1454 = vcmp.eq.f32.partialorder %v1453, 8.507059e+37
    %v1455 = vand.u32 %v1443, 2147483648
    %v1456 = vor.u32 1.1754944e-38, %v1455
    %v1457 = vsel %vm1454, %v1456, %v1452
    %v1458 = vmul.f32 1.0, %v1457
    %v1459 = vrot.slane %v1417, 4
    %v1461 = vtanh.pop %v1459
    %v1462 = vrot.slane %v1417, 6
    %v1464 = vxor.u32 %v1462, 2147483648
    %v1465 = vmul.f32 %v1464, 1.442695
    %v1466 = vpow.pop %v1465
    %v1467 = vadd.f32 %v1466, 1.0
    %v1468 = vrcp.pop %v1467
    %v1469 = vmul.f32 %v1467, %v1468
    %v1470 = vsub.f32 1.0, %v1469
    %v1471 = vmul.f32 %v1468, %v1470
    %v1472 = vadd.f32 %v1468, %v1471
    %vm1473 = vweird.f32 %v1467
    %vm1474 = vweird.f32 %v1468
    %vm1475 = vmor %vm1473, %vm1474
    %v1476 = vsel %vm1475, %v1468, %v1472
    %v1477 = vand.u32 2147483647, %v1467
    %vm1478 = vcmp.eq.f32.partialorder %v1477, 8.507059e+37
    %v1479 = vand.u32 %v1467, 2147483648
    %v1480 = vor.u32 1.1754944e-38, %v1479
    %v1481 = vsel %vm1478, %v1480, %v1476
    %v1482 = vmul.f32 1.0, %v1481
    %v1483 = vmul.f32 %v1458, %v1311
    %v1484 = vmul.f32 %v1436, %v1461
    %v1485 = vadd.f32 %v1483, %v1484
    %v1486 = vtanh.pop %v1485
    %v1487 = vmul.f32 %v1482, %v1486
    %s1488 = scalar_lea.vmem %s1, 10
    %v1489 = vld [vmem:[%s1488] sm:$0x3]
    %1491 = vset.pattern.permute.xlu0 0
    %1492 = vperm.xlu0 %1491, %v1489
    %v1493 = vpop.permute.xlu0 %1492
    %v1495 = vmul.f32 %v1487, %v1493
    %s1496 = scalar_lea.vmem [#allocation3], 10
    %1497 = vst [vmem:[%s1496] sm:$0x3] %v1495
    %s1498 = scalar_lea.vmem [#allocation2], 48
    %v1499 = vld [vmem:[%s1498] sm:$0xff]
    %1500 = vmatpush.msra.mxu0 %v453
    %1501 = vmatpush.msra.mxu0 %v449
    %1502 = vmatpush.msra.mxu0 %v445
    %1503 = vmatpush.msra.mxu0 %v441
    %1504 = vmatpush.msra.mxu0 %v437
    %1505 = vmatpush.msra.mxu0 %v433
    %1506 = vmatpush.msra.mxu0 %v429
    %1507 = vmatpush.msra.mxu0 %v425
    %1508 = vmatpush.msra.mxu0 %v421
    %1509 = vmatpush.msra.mxu0 %v417
    %1510 = vmatpush.msra.mxu0 %v413
    %1511 = vmatpush.msra.mxu0 %v409
    %1512 = vmatpush.msra.mxu0 %v405
    %1513 = vmatpush.msra.mxu0 %v401
    %1514 = vmatpush.msra.mxu0 %v397
    %1515 = vmatpush.msra.mxu0 %v393
    %1516 = vmatmul.f32.gmra.mxu0 %v1487
    %v1517 = vpop.f32.mrf.mxu0
    %v1518 = vadd.f32 0.0, %v1517
    %1519 = vdwg.mxu0
    %1520 = vmatpush.msra.mxu0 %v454
    %1521 = vmatpush.msra.mxu0 %v450
    %1522 = vmatpush.msra.mxu0 %v446
    %1523 = vmatpush.msra.mxu0 %v442
    %1524 = vmatpush.msra.mxu0 %v438
    %1525 = vmatpush.msra.mxu0 %v434
    %1526 = vmatpush.msra.mxu0 %v430
    %1527 = vmatpush.msra.mxu0 %v426
    %1528 = vmatpush.msra.mxu0 %v422
    %1529 = vmatpush.msra.mxu0 %v418
    %1530 = vmatpush.msra.mxu0 %v414
    %1531 = vmatpush.msra.mxu0 %v410
    %1532 = vmatpush.msra.mxu0 %v406
    %1533 = vmatpush.msra.mxu0 %v402
    %1534 = vmatpush.msra.mxu0 %v398
    %1535 = vmatpush.msra.mxu0 %v394
    %1536 = vmatmul.f32.gmra.mxu0 %v1487
    %v1537 = vpop.f32.mrf.mxu0
    %v1538 = vadd.f32 0.0, %v1537
    %1539 = vdwg.mxu0
    %1540 = vmatpush.msra.mxu0 %v455
    %1541 = vmatpush.msra.mxu0 %v451
    %1542 = vmatpush.msra.mxu0 %v447
    %1543 = vmatpush.msra.mxu0 %v443
    %1544 = vmatpush.msra.mxu0 %v439
    %1545 = vmatpush.msra.mxu0 %v435
    %1546 = vmatpush.msra.mxu0 %v431
    %1547 = vmatpush.msra.mxu0 %v427
    %1548 = vmatpush.msra.mxu0 %v423
    %1549 = vmatpush.msra.mxu0 %v419
    %1550 = vmatpush.msra.mxu0 %v415
    %1551 = vmatpush.msra.mxu0 %v411
    %1552 = vmatpush.msra.mxu0 %v407
    %1553 = vmatpush.msra.mxu0 %v403
    %1554 = vmatpush.msra.mxu0 %v399
    %1555 = vmatpush.msra.mxu0 %v395
    %1556 = vmatmul.f32.gmra.mxu0 %v1487
    %v1557 = vpop.f32.mrf.mxu0
    %v1558 = vadd.f32 0.0, %v1557
    %1559 = vdwg.mxu0
    %1560 = vmatpush.msra.mxu0 %v456
    %1561 = vmatpush.msra.mxu0 %v452
    %1562 = vmatpush.msra.mxu0 %v448
    %1563 = vmatpush.msra.mxu0 %v444
    %1564 = vmatpush.msra.mxu0 %v440
    %1565 = vmatpush.msra.mxu0 %v436
    %1566 = vmatpush.msra.mxu0 %v432
    %1567 = vmatpush.msra.mxu0 %v428
    %1568 = vmatpush.msra.mxu0 %v424
    %1569 = vmatpush.msra.mxu0 %v420
    %1570 = vmatpush.msra.mxu0 %v416
    %1571 = vmatpush.msra.mxu0 %v412
    %1572 = vmatpush.msra.mxu0 %v408
    %1573 = vmatpush.msra.mxu0 %v404
    %1574 = vmatpush.msra.mxu0 %v400
    %1575 = vmatpush.msra.mxu0 %v396
    %1576 = vmatmul.f32.gmra.mxu0 %v1487
    %v1577 = vpop.f32.mrf.mxu0
    %v1578 = vadd.f32 0.0, %v1577
    %1579 = vdwg.mxu0
    %v1584 = vrot.slane %v1538, 6
    %v1585 = vrot.slane %v1558, 4
    %v1586 = vrot.slane %v1578, 2
    %v1587 = vsel %vm339, %v1518, %v1584
    %v1588 = vsel %vm341, %v1585, %v1586
    %v1589 = vsel %vm343, %v1587, %v1588
    %v1591 = vadd.f32 %v1499, %v1589
    %v1592 = vxor.u32 %v1591, 2147483648
    %v1593 = vmul.f32 %v1592, 1.442695
    %v1594 = vpow.pop %v1593
    %v1595 = vadd.f32 %v1594, 1.0
    %v1596 = vrcp.pop %v1595
    %v1597 = vmul.f32 %v1595, %v1596
    %v1598 = vsub.f32 1.0, %v1597
    %v1599 = vmul.f32 %v1596, %v1598
    %v1600 = vadd.f32 %v1596, %v1599
    %vm1601 = vweird.f32 %v1595
    %vm1602 = vweird.f32 %v1596
    %vm1603 = vmor %vm1601, %vm1602
    %v1604 = vsel %vm1603, %v1596, %v1600
    %v1605 = vand.u32 2147483647, %v1595
    %vm1606 = vcmp.eq.f32.partialorder %v1605, 8.507059e+37
    %v1607 = vand.u32 %v1595, 2147483648
    %v1608 = vor.u32 1.1754944e-38, %v1607
    %v1609 = vsel %vm1606, %v1608, %v1604
    %v1610 = vmul.f32 1.0, %v1609
    %v1612 = vrot.slane %v1591, 2
    %v1614 = vxor.u32 %v1612, 2147483648
    %v1615 = vmul.f32 %v1614, 1.442695
    %v1616 = vpow.pop %v1615
    %v1617 = vadd.f32 %v1616, 1.0
    %v1618 = vrcp.pop %v1617
    %v1619 = vmul.f32 %v1617, %v1618
    %v1620 = vsub.f32 1.0, %v1619
    %v1621 = vmul.f32 %v1618, %v1620
    %v1622 = vadd.f32 %v1618, %v1621
    %vm1623 = vweird.f32 %v1617
    %vm1624 = vweird.f32 %v1618
    %vm1625 = vmor %vm1623, %vm1624
    %v1626 = vsel %vm1625, %v1618, %v1622
    %v1627 = vand.u32 2147483647, %v1617
    %vm1628 = vcmp.eq.f32.partialorder %v1627, 8.507059e+37
    %v1629 = vand.u32 %v1617, 2147483648
    %v1630 = vor.u32 1.1754944e-38, %v1629
    %v1631 = vsel %vm1628, %v1630, %v1626
    %v1632 = vmul.f32 1.0, %v1631
    %v1633 = vrot.slane %v1591, 4
    %v1635 = vtanh.pop %v1633
    %v1636 = vrot.slane %v1591, 6
    %v1638 = vxor.u32 %v1636, 2147483648
    %v1639 = vmul.f32 %v1638, 1.442695
    %v1640 = vpow.pop %v1639
    %v1641 = vadd.f32 %v1640, 1.0
    %v1642 = vrcp.pop %v1641
    %v1643 = vmul.f32 %v1641, %v1642
    %v1644 = vsub.f32 1.0, %v1643
    %v1645 = vmul.f32 %v1642, %v1644
    %v1646 = vadd.f32 %v1642, %v1645
    %vm1647 = vweird.f32 %v1641
    %vm1648 = vweird.f32 %v1642
    %vm1649 = vmor %vm1647, %vm1648
    %v1650 = vsel %vm1649, %v1642, %v1646
    %v1651 = vand.u32 2147483647, %v1641
    %vm1652 = vcmp.eq.f32.partialorder %v1651, 8.507059e+37
    %v1653 = vand.u32 %v1641, 2147483648
    %v1654 = vor.u32 1.1754944e-38, %v1653
    %v1655 = vsel %vm1652, %v1654, %v1650
    %v1656 = vmul.f32 1.0, %v1655
    %v1657 = vmul.f32 %v1632, %v1485
    %v1658 = vmul.f32 %v1610, %v1635
    %v1659 = vadd.f32 %v1657, %v1658
    %v1660 = vtanh.pop %v1659
    %v1661 = vmul.f32 %v1656, %v1660
    %s1662 = scalar_lea.vmem %s1, 12
    %v1663 = vld [vmem:[%s1662] sm:$0x3]
    %1665 = vset.pattern.permute.xlu0 0
    %1666 = vperm.xlu0 %1665, %v1663
    %v1667 = vpop.permute.xlu0 %1666
    %v1669 = vmul.f32 %v1661, %v1667
    %s1670 = scalar_lea.vmem [#allocation3], 12
    %1671 = vst [vmem:[%s1670] sm:$0x3] %v1669
    %s1672 = scalar_lea.vmem [#allocation2], 56
    %v1673 = vld [vmem:[%s1672] sm:$0xff]
    %1674 = vmatpush.msra.mxu0 %v453
    %1675 = vmatpush.msra.mxu0 %v449
    %1676 = vmatpush.msra.mxu0 %v445
    %1677 = vmatpush.msra.mxu0 %v441
    %1678 = vmatpush.msra.mxu0 %v437
    %1679 = vmatpush.msra.mxu0 %v433
    %1680 = vmatpush.msra.mxu0 %v429
    %1681 = vmatpush.msra.mxu0 %v425
    %1682 = vmatpush.msra.mxu0 %v421
    %1683 = vmatpush.msra.mxu0 %v417
    %1684 = vmatpush.msra.mxu0 %v413
    %1685 = vmatpush.msra.mxu0 %v409
    %1686 = vmatpush.msra.mxu0 %v405
    %1687 = vmatpush.msra.mxu0 %v401
    %1688 = vmatpush.msra.mxu0 %v397
    %1689 = vmatpush.msra.mxu0 %v393
    %1690 = vmatmul.f32.gmra.mxu0 %v1661
    %v1691 = vpop.f32.mrf.mxu0
    %v1692 = vadd.f32 0.0, %v1691
    %1693 = vdwg.mxu0
    %1694 = vmatpush.msra.mxu0 %v454
    %1695 = vmatpush.msra.mxu0 %v450
    %1696 = vmatpush.msra.mxu0 %v446
    %1697 = vmatpush.msra.mxu0 %v442
    %1698 = vmatpush.msra.mxu0 %v438
    %1699 = vmatpush.msra.mxu0 %v434
    %1700 = vmatpush.msra.mxu0 %v430
    %1701 = vmatpush.msra.mxu0 %v426
    %1702 = vmatpush.msra.mxu0 %v422
    %1703 = vmatpush.msra.mxu0 %v418
    %1704 = vmatpush.msra.mxu0 %v414
    %1705 = vmatpush.msra.mxu0 %v410
    %1706 = vmatpush.msra.mxu0 %v406
    %1707 = vmatpush.msra.mxu0 %v402
    %1708 = vmatpush.msra.mxu0 %v398
    %1709 = vmatpush.msra.mxu0 %v394
    %1710 = vmatmul.f32.gmra.mxu0 %v1661
    %v1711 = vpop.f32.mrf.mxu0
    %v1712 = vadd.f32 0.0, %v1711
    %1713 = vdwg.mxu0
    %1714 = vmatpush.msra.mxu0 %v455
    %1715 = vmatpush.msra.mxu0 %v451
    %1716 = vmatpush.msra.mxu0 %v447
    %1717 = vmatpush.msra.mxu0 %v443
    %1718 = vmatpush.msra.mxu0 %v439
    %1719 = vmatpush.msra.mxu0 %v435
    %1720 = vmatpush.msra.mxu0 %v431
    %1721 = vmatpush.msra.mxu0 %v427
    %1722 = vmatpush.msra.mxu0 %v423
    %1723 = vmatpush.msra.mxu0 %v419
    %1724 = vmatpush.msra.mxu0 %v415
    %1725 = vmatpush.msra.mxu0 %v411
    %1726 = vmatpush.msra.mxu0 %v407
    %1727 = vmatpush.msra.mxu0 %v403
    %1728 = vmatpush.msra.mxu0 %v399
    %1729 = vmatpush.msra.mxu0 %v395
    %1730 = vmatmul.f32.gmra.mxu0 %v1661
    %v1731 = vpop.f32.mrf.mxu0
    %v1732 = vadd.f32 0.0, %v1731
    %1733 = vdwg.mxu0
    %1734 = vmatpush.msra.mxu0 %v456
    %1735 = vmatpush.msra.mxu0 %v452
    %1736 = vmatpush.msra.mxu0 %v448
    %1737 = vmatpush.msra.mxu0 %v444
    %1738 = vmatpush.msra.mxu0 %v440
    %1739 = vmatpush.msra.mxu0 %v436
    %1740 = vmatpush.msra.mxu0 %v432
    %1741 = vmatpush.msra.mxu0 %v428
    %1742 = vmatpush.msra.mxu0 %v424
    %1743 = vmatpush.msra.mxu0 %v420
    %1744 = vmatpush.msra.mxu0 %v416
    %1745 = vmatpush.msra.mxu0 %v412
    %1746 = vmatpush.msra.mxu0 %v408
    %1747 = vmatpush.msra.mxu0 %v404
    %1748 = vmatpush.msra.mxu0 %v400
    %1749 = vmatpush.msra.mxu0 %v396
    %1750 = vmatmul.f32.gmra.mxu0 %v1661
    %v1751 = vpop.f32.mrf.mxu0
    %v1752 = vadd.f32 0.0, %v1751
    %1753 = vdwg.mxu0
    %v1758 = vrot.slane %v1712, 6
    %v1759 = vrot.slane %v1732, 4
    %v1760 = vrot.slane %v1752, 2
    %v1761 = vsel %vm339, %v1692, %v1758
    %v1762 = vsel %vm341, %v1759, %v1760
    %v1763 = vsel %vm343, %v1761, %v1762
    %v1765 = vadd.f32 %v1673, %v1763
    %v1766 = vxor.u32 %v1765, 2147483648
    %v1767 = vmul.f32 %v1766, 1.442695
    %v1768 = vpow.pop %v1767
    %v1769 = vadd.f32 %v1768, 1.0
    %v1770 = vrcp.pop %v1769
    %v1771 = vmul.f32 %v1769, %v1770
    %v1772 = vsub.f32 1.0, %v1771
    %v1773 = vmul.f32 %v1770, %v1772
    %v1774 = vadd.f32 %v1770, %v1773
    %vm1775 = vweird.f32 %v1769
    %vm1776 = vweird.f32 %v1770
    %vm1777 = vmor %vm1775, %vm1776
    %v1778 = vsel %vm1777, %v1770, %v1774
    %v1779 = vand.u32 2147483647, %v1769
    %vm1780 = vcmp.eq.f32.partialorder %v1779, 8.507059e+37
    %v1781 = vand.u32 %v1769, 2147483648
    %v1782 = vor.u32 1.1754944e-38, %v1781
    %v1783 = vsel %vm1780, %v1782, %v1778
    %v1784 = vmul.f32 1.0, %v1783
    %v1786 = vrot.slane %v1765, 2
    %v1788 = vxor.u32 %v1786, 2147483648
    %v1789 = vmul.f32 %v1788, 1.442695
    %v1790 = vpow.pop %v1789
    %v1791 = vadd.f32 %v1790, 1.0
    %v1792 = vrcp.pop %v1791
    %v1793 = vmul.f32 %v1791, %v1792
    %v1794 = vsub.f32 1.0, %v1793
    %v1795 = vmul.f32 %v1792, %v1794
    %v1796 = vadd.f32 %v1792, %v1795
    %vm1797 = vweird.f32 %v1791
    %vm1798 = vweird.f32 %v1792
    %vm1799 = vmor %vm1797, %vm1798
    %v1800 = vsel %vm1799, %v1792, %v1796
    %v1801 = vand.u32 2147483647, %v1791
    %vm1802 = vcmp.eq.f32.partialorder %v1801, 8.507059e+37
    %v1803 = vand.u32 %v1791, 2147483648
    %v1804 = vor.u32 1.1754944e-38, %v1803
    %v1805 = vsel %vm1802, %v1804, %v1800
    %v1806 = vmul.f32 1.0, %v1805
    %v1807 = vrot.slane %v1765, 4
    %v1809 = vtanh.pop %v1807
    %v1810 = vrot.slane %v1765, 6
    %v1812 = vxor.u32 %v1810, 2147483648
    %v1813 = vmul.f32 %v1812, 1.442695
    %v1814 = vpow.pop %v1813
    %v1815 = vadd.f32 %v1814, 1.0
    %v1816 = vrcp.pop %v1815
    %v1817 = vmul.f32 %v1815, %v1816
    %v1818 = vsub.f32 1.0, %v1817
    %v1819 = vmul.f32 %v1816, %v1818
    %v1820 = vadd.f32 %v1816, %v1819
    %vm1821 = vweird.f32 %v1815
    %vm1822 = vweird.f32 %v1816
    %vm1823 = vmor %vm1821, %vm1822
    %v1824 = vsel %vm1823, %v1816, %v1820
    %v1825 = vand.u32 2147483647, %v1815
    %vm1826 = vcmp.eq.f32.partialorder %v1825, 8.507059e+37
    %v1827 = vand.u32 %v1815, 2147483648
    %v1828 = vor.u32 1.1754944e-38, %v1827
    %v1829 = vsel %vm1826, %v1828, %v1824
    %v1830 = vmul.f32 1.0, %v1829
    %v1831 = vmul.f32 %v1806, %v1659
    %v1832 = vmul.f32 %v1784, %v1809
    %v1833 = vadd.f32 %v1831, %v1832
    %v1834 = vtanh.pop %v1833
    %v1835 = vmul.f32 %v1830, %v1834
    %s1836 = scalar_lea.vmem %s1, 14
    %v1837 = vld [vmem:[%s1836] sm:$0x3]
    %1839 = vset.pattern.permute.xlu0 0
    %1840 = vperm.xlu0 %1839, %v1837
    %v1841 = vpop.permute.xlu0 %1840
    %v1843 = vmul.f32 %v1835, %v1841
    %s1844 = scalar_lea.vmem [#allocation3], 14
    %1845 = vst [vmem:[%s1844] sm:$0x3] %v1843
    %v1846 = vld [vmem:[#allocation3] sm:$0x3]
    %v1847 = vld [vmem:[#allocation3 + $0x2] sm:$0x3]
    %v1848 = vld [vmem:[#allocation3 + $0x4] sm:$0x3]
    %v1849 = vld [vmem:[#allocation3 + $0x6] sm:$0x3]
    %v1850 = vld [vmem:[#allocation3 + $0x8] sm:$0x3]
    %v1851 = vld [vmem:[#allocation3 + $0xa] sm:$0x3]
    %v1852 = vld [vmem:[#allocation3 + $0xc] sm:$0x3]
    %v1853 = vld [vmem:[#allocation3 + $0xe] sm:$0x3]
    %1854 = vst.msk [vmem:[#allocation13] sm:$0x3] %vm191, %v1846
    %1855 = vst.msk [vmem:[#allocation13 + $0x2] sm:$0x3] %vm191, %v1847
    %1856 = vst.msk [vmem:[#allocation13 + $0x4] sm:$0x3] %vm191, %v1848
    %1857 = vst.msk [vmem:[#allocation13 + $0x6] sm:$0x3] %vm191, %v1849
    %1858 = vst.msk [vmem:[#allocation13 + $0x8] sm:$0x3] %vm191, %v1850
    %1859 = vst.msk [vmem:[#allocation13 + $0xa] sm:$0x3] %vm191, %v1851
    %1860 = vst.msk [vmem:[#allocation13 + $0xc] sm:$0x3] %vm191, %v1852
    %1861 = vst.msk [vmem:[#allocation13 + $0xe] sm:$0x3] %vm191, %v1853
    %v1862 = vld [vmem:[%s8] sm:$0xff]
    %v1863 = vld [vmem:[%s8 + $0x8] sm:$0xff]
    %v1864 = vld [vmem:[%s8 + $0x10] sm:$0xff]
    %v1865 = vld [vmem:[%s8 + $0x18] sm:$0xff]
    %v1866 = vld [vmem:[%s8 + $0x20] sm:$0xff]
    %v1867 = vld [vmem:[%s8 + $0x28] sm:$0xff]
    %v1868 = vld [vmem:[%s8 + $0x30] sm:$0xff]
    %v1869 = vld [vmem:[%s8 + $0x38] sm:$0xff]
    %v1870 = vld [vmem:[%s8 + $0x40] sm:$0xff]
    %v1871 = vld [vmem:[%s8 + $0x48] sm:$0xff]
    %v1872 = vld [vmem:[%s8 + $0x50] sm:$0xff]
    %v1873 = vld [vmem:[%s8 + $0x58] sm:$0xff]
    %v1874 = vld [vmem:[%s8 + $0x60] sm:$0xff]
    %v1875 = vld [vmem:[%s8 + $0x68] sm:$0xff]
    %v1876 = vld [vmem:[%s8 + $0x70] sm:$0xff]
    %v1877 = vld [vmem:[%s8 + $0x78] sm:$0xff]
    %v1878 = vld [vmem:[%s9] sm:$0x1]
    %v1880 = vperm.slane %v1878, 0
    %1890 = vst [vmem:[#allocation1] ss:$4 sm:$0xff] %v1846
    %s1891 = scalar_lea.vmem [#allocation1], 1
    %1892 = vst [vmem:[%s1891] ss:$4 sm:$0xff] %v1847
    %s1893 = scalar_lea.vmem [#allocation1], 2
    %1894 = vst [vmem:[%s1893] ss:$4 sm:$0xff] %v1848
    %s1895 = scalar_lea.vmem [#allocation1], 3
    %1896 = vst [vmem:[%s1895] ss:$4 sm:$0xff] %v1849
    %s1897 = scalar_lea.vmem [#allocation1], 32
    %1898 = vst [vmem:[%s1897] ss:$4 sm:$0xff] %v1850
    %s1899 = scalar_lea.vmem [#allocation1], 33
    %1900 = vst [vmem:[%s1899] ss:$4 sm:$0xff] %v1851
    %s1901 = scalar_lea.vmem [#allocation1], 34
    %1902 = vst [vmem:[%s1901] ss:$4 sm:$0xff] %v1852
    %s1903 = scalar_lea.vmem [#allocation1], 35
    %1904 = vst [vmem:[%s1903] ss:$4 sm:$0xff] %v1853
    %v1905 = vld.sshfl [vmem:[#allocation1] sm:$0xff pattern:$0x73625140]
    %v1906 = vld.sshfl [vmem:[#allocation1 + $0x20] sm:$0xff pattern:$0x73625140]
    %1909 = vmatpush.msra.mxu0 %v1877
    %1910 = vmatpush.msra.mxu0 %v1876
    %1911 = vmatpush.msra.mxu0 %v1875
    %1912 = vmatpush.msra.mxu0 %v1874
    %1913 = vmatpush.msra.mxu0 %v1873
    %1914 = vmatpush.msra.mxu0 %v1872
    %1915 = vmatpush.msra.mxu0 %v1871
    %1916 = vmatpush.msra.mxu0 %v1870
    %1917 = vmatpush.msra.mxu0 %v1869
    %1918 = vmatpush.msra.mxu0 %v1868
    %1919 = vmatpush.msra.mxu0 %v1867
    %1920 = vmatpush.msra.mxu0 %v1866
    %1921 = vmatpush.msra.mxu0 %v1865
    %1922 = vmatpush.msra.mxu0 %v1864
    %1923 = vmatpush.msra.mxu0 %v1863
    %1924 = vmatpush.msra.mxu0 %v1862
    %1925 = vmatmul.f32.gmra.mxu0 %v1905
    %v1926 = vpop.f32.mrf.mxu0
    %v1927 = vadd.f32 %v1880, %v1926
    %1928 = vmatmul.f32.gmra.mxu0 %v1906
    %v1929 = vpop.f32.mrf.mxu0
    %v1930 = vadd.f32 %v1880, %v1929
    %1931 = vdwg.mxu0
    %v1932 = vxor.u32 %v1927, 2147483648
    %v1933 = vxor.u32 %v1930, 2147483648
    %v1934 = vmul.f32 %v1932, 1.442695
    %v1935 = vpow.pop %v1934
    %v1936 = vmul.f32 %v1933, 1.442695
    %v1937 = vpow.pop %v1936
    %v1938 = vadd.f32 %v1935, 1.0
    %v1939 = vadd.f32 %v1937, 1.0
    %v1940 = vrcp.pop %v1938
    %v1941 = vmul.f32 %v1938, %v1940
    %v1942 = vsub.f32 1.0, %v1941
    %v1943 = vmul.f32 %v1940, %v1942
    %v1944 = vadd.f32 %v1940, %v1943
    %vm1945 = vweird.f32 %v1938
    %vm1946 = vweird.f32 %v1940
    %vm1947 = vmor %vm1945, %vm1946
    %v1948 = vsel %vm1947, %v1940, %v1944
    %v1949 = vand.u32 2147483647, %v1938
    %vm1950 = vcmp.eq.f32.partialorder %v1949, 8.507059e+37
    %v1951 = vand.u32 %v1938, 2147483648
    %v1952 = vor.u32 1.1754944e-38, %v1951
    %v1953 = vsel %vm1950, %v1952, %v1948
    %v1954 = vmul.f32 1.0, %v1953
    %v1955 = vrcp.pop %v1939
    %v1956 = vmul.f32 %v1939, %v1955
    %v1957 = vsub.f32 1.0, %v1956
    %v1958 = vmul.f32 %v1955, %v1957
    %v1959 = vadd.f32 %v1955, %v1958
    %vm1960 = vweird.f32 %v1939
    %vm1961 = vweird.f32 %v1955
    %vm1962 = vmor %vm1960, %vm1961
    %v1963 = vsel %vm1962, %v1955, %v1959
    %v1964 = vand.u32 2147483647, %v1939
    %vm1965 = vcmp.eq.f32.partialorder %v1964, 8.507059e+37
    %v1966 = vand.u32 %v1939, 2147483648
    %v1967 = vor.u32 1.1754944e-38, %v1966
    %v1968 = vsel %vm1965, %v1967, %v1963
    %v1969 = vmul.f32 1.0, %v1968
    %v1972 = vrot.slane %v1954, 2
    %v1973 = vrot.slane %v1954, 4
    %v1974 = vrot.slane %v1954, 6
    %v1975 = vrot.slane %v1969, 2
    %v1976 = vrot.slane %v1969, 4
    %v1977 = vrot.slane %v1969, 6
    %vm1984 = vcmask 58368
    %1985 = vst.msk [vmem:[#allocation12] sm:$0x3] %vm1984, %v1954
    %1986 = vst.msk [vmem:[#allocation12 + $0x2] sm:$0x3] %vm1984, %v1972
    %1987 = vst.msk [vmem:[#allocation12 + $0x4] sm:$0x3] %vm1984, %v1973
    %1988 = vst.msk [vmem:[#allocation12 + $0x6] sm:$0x3] %vm1984, %v1974
    %1989 = vst.msk [vmem:[#allocation12 + $0x8] sm:$0x3] %vm1984, %v1969
    %1990 = vst.msk [vmem:[#allocation12 + $0xa] sm:$0x3] %vm1984, %v1975
    %1991 = vst.msk [vmem:[#allocation12 + $0xc] sm:$0x3] %vm1984, %v1976
    %1992 = vst.msk [vmem:[#allocation12 + $0xe] sm:$0x3] %vm1984, %v1977
    // Predicated region
    $region58: #{tpu_custom_call.1} parent=1 // pred_check
      _
    $region59: #{tpu_custom_call.1} parent=1 // pred_check_branch
      %1994 = sbr.rel (0) target = $region61
    $region60: #{tpu_custom_call.1} parent=1 // pred_region
      %1996 = vsyncadd [#allocation6], 0
      %s1997 = sshll.u32 [#allocation12], 4
      %s1998 = int_to_ptr.vmem [resolvable:$true] %s1997
      %s1999 = sshll.u32 %s10, 4
      %s2000 = int_to_ptr.hbm [resolvable:$true] %s1999
      %2005 = dma.vmem_to_hbm [thread:$0]  %s1998, 256, %s2000, [#allocation6], 32, 32, 2
    $region61: #{tpu_custom_call.1} parent=1 // pred_fallthru
      _
    // Predicated region
    $region62: #{tpu_custom_call.1} parent=1 // pred_check
      _
    $region63: #{tpu_custom_call.1} parent=1 // pred_check_branch
      %2007 = sbr.rel (0) target = $region65
    $region64: #{tpu_custom_call.1} parent=1 // pred_region
      %2009 = vsyncadd [#allocation14], 0
      %s2010 = sshll.u32 [#allocation13], 4
      %s2011 = int_to_ptr.vmem [resolvable:$true] %s2010
      %s2012 = sshll.u32 %s11, 4
      %s2013 = int_to_ptr.hbm [resolvable:$true] %s2012
      %2018 = dma.vmem_to_hbm [thread:$0]  %s2011, 256, %s2013, [#allocation14], 32, 32, 2
    $region65: #{tpu_custom_call.1} parent=1 // pred_fallthru
      _
    // Predicated region
    $region66: #{tpu_custom_call.1} parent=1 // pred_check
      _
    $region67: #{tpu_custom_call.1} parent=1 // pred_check_branch
      %2020 = sbr.rel (0) target = $region69
    $region68: #{tpu_custom_call.1} parent=1 // pred_region
      %2022 = vsyncadd [#allocation14], 0
      %s2023 = sshll.u32 [#allocation15], 4
      %s2024 = int_to_ptr.vmem [resolvable:$true] %s2023
      %s2025 = sshll.u32 %s12, 4
      %s2026 = int_to_ptr.hbm [resolvable:$true] %s2025
      %2031 = dma.vmem_to_hbm [thread:$0]  %s2024, 320, %s2026, [#allocation14], 32, 32, 2
    $region69: #{tpu_custom_call.1} parent=1 // pred_fallthru
      _
    // Predicated region
    $region70: #{tpu_custom_call.1} parent=1 // pred_check
      _
    $region71: #{tpu_custom_call.1} parent=1 // pred_check_branch
      %2033 = sbr.rel (0) target = $region73
    $region72: #{tpu_custom_call.1} parent=1 // pred_region
      %2035 = dma.done [#allocation6], 256
    $region73: #{tpu_custom_call.1} parent=1 // pred_fallthru
      _
    // Predicated region
    $region74: #{tpu_custom_call.1} parent=1 // pred_check
      _
    $region75: #{tpu_custom_call.1} parent=1 // pred_check_branch
      %2037 = sbr.rel (0) target = $region77
    $region76: #{tpu_custom_call.1} parent=1 // pred_region
      %2039 = dma.done [#allocation14], 256
    $region77: #{tpu_custom_call.1} parent=1 // pred_fallthru
      _
    // Predicated region
    $region78: #{tpu_custom_call.1} parent=1 // pred_check
      _
    $region79: #{tpu_custom_call.1} parent=1 // pred_check_branch
      %2041 = sbr.rel (0) target = $region81
    $region80: #{tpu_custom_call.1} parent=1 // pred_region
      %2043 = dma.done [#allocation14], 320
    $region81: #{tpu_custom_call.1} parent=1 // pred_fallthru
      _
    %2044 = vsyncpa [#allocation5], 1
    %2045 = vsyncpa [#allocation8], 1
    %2046 = vsyncpa [#allocation11], 1
    %2047 = vsyncpa [#allocation6], 1
    %2048 = vsyncpa [#allocation14], 1

</llo_original>
